<compile_context>
chip_gen: v6e
topology: v6e:2x2x1
jax: 0.10.0
libtpu: 0.0.40
codegen_flags: <defaults>
</compile_context>

<pallas_src>
import functools

import jax
import jax.numpy as jnp
from jax.experimental import pallas as pl
from jax.experimental.pallas import tpu as pltpu


# ---------------------------------------------------------------------------
# Tap-slab builder: collapse the K dilated taps into one contiguous operand
# ---------------------------------------------------------------------------
def _fill_tap_slab(slab_ref, x, *, k_taps, dilation, pad, l_out):
    """Fill slab_ref[(k*C):(k+1)*C, t] = zero_padded(x)[:, t + k*dilation - pad].

    x:        (C, L_in) value (channels on sublanes, time on lanes)
    slab_ref: (K*C, l_out) VMEM scratch
    All offsets are static Python ints -> static slices, no dynamic indexing.
    """
    c, l_in = x.shape
    slab_ref[...] = jnp.zeros_like(slab_ref)          # in-kernel zero padding
    for k in range(k_taps):                           # static unroll (K small)
        s = k * dilation - pad                        # source offset of tap k
        src_lo = max(s, 0)
        src_hi = min(s + l_out, l_in)
        if src_hi <= src_lo:
            continue                                  # tap lies fully in the pad
        dst_lo = src_lo - s
        dst_hi = src_hi - s
        slab_ref[k * c:(k + 1) * c, dst_lo:dst_hi] = x[:, src_lo:src_hi]


# ---------------------------------------------------------------------------
# Fully fused TemporalConvNet kernel (all blocks, one batch element per step)
# ---------------------------------------------------------------------------
def _tcn_kernel(*refs, cfgs, k_taps, n_in):
    """refs = [x, (w1,b1,w2,b2[,wds,bds]) per layer ..., out, slab scratches...]

    x_ref : (1, Cin0, L)       channels on sublanes / time on lanes
    w*    : (Cout, K*Cin)      conv weights flattened as row index k*Cin + ci
    b*    : (Cout, 1)
    o_ref : (1, Cout_last, L)
    slabs : per layer, (K*Cin, L) and (K*Cout, L) VMEM scratch
    cfgs  : static tuple of (dilation, padding, has_downsample) per layer
    """
    in_refs = refs[:n_in]
    o_ref = refs[n_in]
    slab_refs = refs[n_in + 1:]

    h = in_refs[0][0].astype(jnp.float32)             # (Cin0, L)

    idx = 1
    for li, (dil, pad, has_ds) in enumerate(cfgs):
        w1_ref, b1_ref, w2_ref, b2_ref = in_refs[idx:idx + 4]
        idx += 4
        if has_ds:
            wds_ref, bds_ref = in_refs[idx:idx + 2]
            idx += 2
        slab1, slab2 = slab_refs[2 * li], slab_refs[2 * li + 1]
        l_out = slab1.shape[1]

        # ---- conv1 -> bias -> ReLU  (dropout1 = identity in eval mode) -----
        _fill_tap_slab(slab1, h, k_taps=k_taps, dilation=dil, pad=pad,
                       l_out=l_out)
        h1 = jnp.dot(w1_ref[...], slab1[...],
                     preferred_element_type=jnp.float32)   # one MXU matmul
        h1 = jnp.maximum(h1 + b1_ref[...], 0.0)

        # ---- residual branch: fused 1x1 downsample or identity -------------
        if has_ds:
            res = jnp.dot(wds_ref[...], h,
                          preferred_element_type=jnp.float32) + bds_ref[...]
        else:
            res = h

        # ---- conv2 -> bias -> +residual -> ReLU  (dropout2 = identity) -----
        _fill_tap_slab(slab2, h1, k_taps=k_taps, dilation=dil, pad=pad,
                       l_out=l_out)
        h2 = jnp.dot(w2_ref[...], slab2[...],
                     preferred_element_type=jnp.float32)
        h = jnp.maximum(h2 + b2_ref[...] + res, 0.0)       # stays in VMEM/vregs

    o_ref[0] = h.astype(o_ref.dtype)                       # lane-dense store


# ---------------------------------------------------------------------------
# pallas_call wrapper: one fused call for the whole network
# ---------------------------------------------------------------------------
def temporal_conv_net(x_ncl, params, *, kernel_size):
    """x_ncl: (N, C, L) in PyTorch Conv1d layout (used directly, no transposes)."""
    n, cin0, l = x_ncl.shape

    def const_spec(shape):
        return pl.BlockSpec(shape, lambda i: (0,) * len(shape))

    in_specs = [pl.BlockSpec((1, cin0, l), lambda i: (i, 0, 0))]
    args = [x_ncl]
    scratch_shapes = []
    cfgs = []
    cin = cin0
    for i, (w1, b1, w2, b2, wds, bds) in enumerate(params):
        cout = w1.shape[0]
        dilation = 2 ** i
        padding = (kernel_size - 1) * dilation // 2
        l1 = l + 2 * padding - dilation * (kernel_size - 1)
        assert l1 == l, "sequence length must be preserved (use odd kernel_size)"
        has_ds = wds is not None
        cfgs.append((dilation, padding, has_ds))

        in_specs += [const_spec(w1.shape), const_spec(b1.shape),
                     const_spec(w2.shape), const_spec(b2.shape)]
        args += [w1, b1, w2, b2]
        if has_ds:
            in_specs += [const_spec(wds.shape), const_spec(bds.shape)]
            args += [wds, bds]

        scratch_shapes += [pltpu.VMEM((kernel_size * cin, l), jnp.float32),
                           pltpu.VMEM((kernel_size * cout, l), jnp.float32)]
        cin = cout

    cout_final = cin
    kern = functools.partial(_tcn_kernel, cfgs=tuple(cfgs),
                             k_taps=kernel_size, n_in=len(args))

    return pl.pallas_call(
        kern,
        out_shape=jax.ShapeDtypeStruct((n, cout_final, l), x_ncl.dtype),
        grid=(n,),                        # batch axis: parallel -> both v7x TCs
        in_specs=in_specs,
        out_specs=pl.BlockSpec((1, cout_final, l), lambda i: (i, 0, 0)),
        scratch_shapes=scratch_shapes,
        compiler_params=pltpu.CompilerParams(
            dimension_semantics=("parallel",)),
    )(*args)


# ---------------------------------------------------------------------------
# Deterministic parameter construction (weight_norm folded: effective W == v)
# ---------------------------------------------------------------------------
def init_params(key, num_inputs, num_channels, kernel_size):
    params = []
    for i, out_ch in enumerate(num_channels):
        in_ch = num_inputs if i == 0 else num_channels[i - 1]
        key, k1, k2, k3, k4, k5, k6 = jax.random.split(key, 7)

        def conv_weight(k, cin, cout, ksz, std=0.01):
            # weight_norm: v ~ N(0, std), g = ||v|| per out channel -> W_eff == v
            v = std * jax.random.normal(k, (cout, cin, ksz), jnp.float32)
            # flatten (Cout, Cin, K) -> (Cout, K*Cin) with row order k*Cin + ci
            return jnp.transpose(v, (0, 2, 1)).reshape(cout, ksz * cin)

        def conv_bias(k, cin, cout, ksz):
            bound = 1.0 / float((cin * ksz) ** 0.5)
            return jax.random.uniform(k, (cout, 1), jnp.float32, -bound, bound)

        w1 = conv_weight(k1, in_ch, out_ch, kernel_size)
        b1 = conv_bias(k2, in_ch, out_ch, kernel_size)
        w2 = conv_weight(k3, out_ch, out_ch, kernel_size)
        b2 = conv_bias(k4, out_ch, out_ch, kernel_size)
        if in_ch != out_ch:
            wds = conv_weight(k5, in_ch, out_ch, 1)   # (Cout, Cin), N(0, 0.01)
            bds = conv_bias(k6, in_ch, out_ch, 1)
        else:
            wds, bds = None, None
        params.append((w1, b1, w2, b2, wds, bds))
    return params


# ---------------------------------------------------------------------------
if __name__ == "__main__":
    key = jax.random.PRNGKey(0)
    kx, kp = jax.random.split(key)

    num_inputs = 4
    num_channels = (8, 8, 16)     # exercises both downsample and identity residuals
    kernel_size = 3
    batch, seq_len = 2, 128       # L multiple of 128 -> lane-dense time axis

    x = jax.random.normal(kx, (batch, num_inputs, seq_len), jnp.float32)  # (N, C, L)
    params = init_params(kp, num_inputs, num_channels, kernel_size)

    fwd = jax.jit(functools.partial(temporal_conv_net, kernel_size=kernel_size))
    out = jax.block_until_ready(fwd(x, params))

    assert out.shape == (batch, num_channels[-1], seq_len), out.shape
    assert bool(jnp.all(jnp.isfinite(out)))
    print("KERNEL_OK")
</pallas_src>

<mosaic_0001>
module attributes {stable_mosaic.version = 11 : i64} {
  func.func @_tcn_kernel(%arg0: i32, %arg1: memref<1x4x128xf32, #tpu.memory_space<vmem>>, %arg2: memref<8x12xf32, #tpu.memory_space<vmem>>, %arg3: memref<8x1xf32, #tpu.memory_space<vmem>>, %arg4: memref<8x24xf32, #tpu.memory_space<vmem>>, %arg5: memref<8x1xf32, #tpu.memory_space<vmem>>, %arg6: memref<8x4xf32, #tpu.memory_space<vmem>>, %arg7: memref<8x1xf32, #tpu.memory_space<vmem>>, %arg8: memref<8x24xf32, #tpu.memory_space<vmem>>, %arg9: memref<8x1xf32, #tpu.memory_space<vmem>>, %arg10: memref<8x24xf32, #tpu.memory_space<vmem>>, %arg11: memref<8x1xf32, #tpu.memory_space<vmem>>, %arg12: memref<16x24xf32, #tpu.memory_space<vmem>>, %arg13: memref<16x1xf32, #tpu.memory_space<vmem>>, %arg14: memref<16x48xf32, #tpu.memory_space<vmem>>, %arg15: memref<16x1xf32, #tpu.memory_space<vmem>>, %arg16: memref<16x8xf32, #tpu.memory_space<vmem>>, %arg17: memref<16x1xf32, #tpu.memory_space<vmem>>, %arg18: memref<1x16x128xf32, #tpu.memory_space<vmem>>, %arg19: memref<12x128xf32, #tpu.memory_space<vmem>>, %arg20: memref<24x128xf32, #tpu.memory_space<vmem>>, %arg21: memref<24x128xf32, #tpu.memory_space<vmem>>, %arg22: memref<24x128xf32, #tpu.memory_space<vmem>>, %arg23: memref<24x128xf32, #tpu.memory_space<vmem>>, %arg24: memref<48x128xf32, #tpu.memory_space<vmem>>) attributes {dimension_semantics = [#tpu.dimension_semantics<parallel>], iteration_bounds = array<i64: 2>, scalar_prefetch = 0 : i64, scratch_operands = 6 : i64, tpu.core_type = #tpu.core_type<tc>, window_params = [{transform_indices = @transform_0, window_bounds = array<i64: 1, 4, 128>}, {pipeline_mode = #tpu.pipeline_mode<synchronous>, transform_indices = @transform_1, window_bounds = array<i64: 8, 12>}, {pipeline_mode = #tpu.pipeline_mode<synchronous>, transform_indices = @transform_2, window_bounds = array<i64: 8, 1>}, {pipeline_mode = #tpu.pipeline_mode<synchronous>, transform_indices = @transform_3, window_bounds = array<i64: 8, 24>}, {pipeline_mode = #tpu.pipeline_mode<synchronous>, transform_indices = @transform_4, window_bounds = array<i64: 8, 1>}, {pipeline_mode = #tpu.pipeline_mode<synchronous>, transform_indices = @transform_5, window_bounds = array<i64: 8, 4>}, {pipeline_mode = #tpu.pipeline_mode<synchronous>, transform_indices = @transform_6, window_bounds = array<i64: 8, 1>}, {pipeline_mode = #tpu.pipeline_mode<synchronous>, transform_indices = @transform_7, window_bounds = array<i64: 8, 24>}, {pipeline_mode = #tpu.pipeline_mode<synchronous>, transform_indices = @transform_8, window_bounds = array<i64: 8, 1>}, {pipeline_mode = #tpu.pipeline_mode<synchronous>, transform_indices = @transform_9, window_bounds = array<i64: 8, 24>}, {pipeline_mode = #tpu.pipeline_mode<synchronous>, transform_indices = @transform_10, window_bounds = array<i64: 8, 1>}, {pipeline_mode = #tpu.pipeline_mode<synchronous>, transform_indices = @transform_11, window_bounds = array<i64: 16, 24>}, {pipeline_mode = #tpu.pipeline_mode<synchronous>, transform_indices = @transform_12, window_bounds = array<i64: 16, 1>}, {pipeline_mode = #tpu.pipeline_mode<synchronous>, transform_indices = @transform_13, window_bounds = array<i64: 16, 48>}, {pipeline_mode = #tpu.pipeline_mode<synchronous>, transform_indices = @transform_14, window_bounds = array<i64: 16, 1>}, {pipeline_mode = #tpu.pipeline_mode<synchronous>, transform_indices = @transform_15, window_bounds = array<i64: 16, 8>}, {pipeline_mode = #tpu.pipeline_mode<synchronous>, transform_indices = @transform_16, window_bounds = array<i64: 16, 1>}, {transform_indices = @transform_17, window_bounds = array<i64: 1, 16, 128>}]} {
    %c0 = arith.constant 0 : index
    %c0_0 = arith.constant 0 : index
    %c0_1 = arith.constant 0 : index
    %0 = vector.load %arg1[%c0, %c0_0, %c0_1] : memref<1x4x128xf32, #tpu.memory_space<vmem>>, vector<1x4x128xf32>
    %1 = vector.shape_cast %0 : vector<1x4x128xf32> to vector<4x128xf32>
    %cst = arith.constant 0.000000e+00 : f32
    %2 = vector.broadcast %cst : f32 to vector<12x128xf32>
    %c0_2 = arith.constant 0 : index
    %c0_3 = arith.constant 0 : index
    %3 = vector.load %arg19[%c0_2, %c0_3] : memref<12x128xf32, #tpu.memory_space<vmem>>, vector<12x128xf32>
    tpu.vector_store %arg19[%c0_2, %c0_3], %2 {strides = array<i32>} : memref<12x128xf32, #tpu.memory_space<vmem>>, vector<12x128xf32>,
    %4 = vector.extract_strided_slice %1 {offsets = [0, 0], sizes = [4, 127], strides = [1, 1]} : vector<4x128xf32> to vector<4x127xf32>
    %c0_4 = arith.constant 0 : index
    %c1 = arith.constant 1 : index
    %5 = vector.load %arg19[%c0_4, %c1] : memref<12x128xf32, #tpu.memory_space<vmem>>, vector<4x127xf32>
    tpu.vector_store %arg19[%c0_4, %c1], %4 {strides = array<i32>} : memref<12x128xf32, #tpu.memory_space<vmem>>, vector<4x127xf32>,
    %c4 = arith.constant 4 : index
    %c0_5 = arith.constant 0 : index
    %6 = vector.load %arg19[%c4, %c0_5] : memref<12x128xf32, #tpu.memory_space<vmem>>, vector<4x128xf32>
    tpu.vector_store %arg19[%c4, %c0_5], %1 {strides = array<i32>} : memref<12x128xf32, #tpu.memory_space<vmem>>, vector<4x128xf32>,
    %7 = vector.extract_strided_slice %1 {offsets = [0, 1], sizes = [4, 127], strides = [1, 1]} : vector<4x128xf32> to vector<4x127xf32>
    %c8 = arith.constant 8 : index
    %c0_6 = arith.constant 0 : index
    %8 = vector.load %arg19[%c8, %c0_6] : memref<12x128xf32, #tpu.memory_space<vmem>>, vector<4x127xf32>
    tpu.vector_store %arg19[%c8, %c0_6], %7 {strides = array<i32>} : memref<12x128xf32, #tpu.memory_space<vmem>>, vector<4x127xf32>,
    %c0_7 = arith.constant 0 : index
    %c0_8 = arith.constant 0 : index
    %9 = vector.load %arg2[%c0_7, %c0_8] : memref<8x12xf32, #tpu.memory_space<vmem>>, vector<8x12xf32>
    %c0_9 = arith.constant 0 : index
    %c0_10 = arith.constant 0 : index
    %10 = vector.load %arg19[%c0_9, %c0_10] : memref<12x128xf32, #tpu.memory_space<vmem>>, vector<12x128xf32>
    %cst_11 = arith.constant dense<0.000000e+00> : vector<8x128xf32>
    %11 = tpu.matmul %9, %10, %cst_11 {dimension_numbers = #tpu.dot_dimension_numbers<[1], [0], [0], [1], [0, 0, 1, 1], [], []>} : vector<8x12xf32>, vector<12x128xf32>, vector<8x128xf32> -> vector<8x128xf32>
    %c0_12 = arith.constant 0 : index
    %c0_13 = arith.constant 0 : index
    %12 = vector.load %arg3[%c0_12, %c0_13] : memref<8x1xf32, #tpu.memory_space<vmem>>, vector<8x1xf32>
    %13 = vector.broadcast %12 : vector<8x1xf32> to vector<8x128xf32>
    %14 = arith.addf %11, %13 : vector<8x128xf32>
    %cst_14 = arith.constant 0.000000e+00 : f32
    %15 = vector.broadcast %cst_14 : f32 to vector<8x128xf32>
    %16 = arith.maximumf %14, %15 : vector<8x128xf32>
    %c0_15 = arith.constant 0 : index
    %c0_16 = arith.constant 0 : index
    %17 = vector.load %arg6[%c0_15, %c0_16] : memref<8x4xf32, #tpu.memory_space<vmem>>, vector<8x4xf32>
    %cst_17 = arith.constant dense<0.000000e+00> : vector<8x128xf32>
    %18 = tpu.matmul %17, %1, %cst_17 {dimension_numbers = #tpu.dot_dimension_numbers<[1], [0], [0], [1], [0, 0, 1, 1], [], []>} : vector<8x4xf32>, vector<4x128xf32>, vector<8x128xf32> -> vector<8x128xf32>
    %c0_18 = arith.constant 0 : index
    %c0_19 = arith.constant 0 : index
    %19 = vector.load %arg7[%c0_18, %c0_19] : memref<8x1xf32, #tpu.memory_space<vmem>>, vector<8x1xf32>
    %20 = vector.broadcast %19 : vector<8x1xf32> to vector<8x128xf32>
    %21 = arith.addf %18, %20 : vector<8x128xf32>
    %cst_20 = arith.constant 0.000000e+00 : f32
    %22 = vector.broadcast %cst_20 : f32 to vector<24x128xf32>
    %c0_21 = arith.constant 0 : index
    %c0_22 = arith.constant 0 : index
    %23 = vector.load %arg20[%c0_21, %c0_22] : memref<24x128xf32, #tpu.memory_space<vmem>>, vector<24x128xf32>
    tpu.vector_store %arg20[%c0_21, %c0_22], %22 {strides = array<i32>} : memref<24x128xf32, #tpu.memory_space<vmem>>, vector<24x128xf32>,
    %24 = vector.extract_strided_slice %16 {offsets = [0, 0], sizes = [8, 127], strides = [1, 1]} : vector<8x128xf32> to vector<8x127xf32>
    %c0_23 = arith.constant 0 : index
    %c1_24 = arith.constant 1 : index
    %25 = vector.load %arg20[%c0_23, %c1_24] : memref<24x128xf32, #tpu.memory_space<vmem>>, vector<8x127xf32>
    tpu.vector_store %arg20[%c0_23, %c1_24], %24 {strides = array<i32>} : memref<24x128xf32, #tpu.memory_space<vmem>>, vector<8x127xf32>,
    %c8_25 = arith.constant 8 : index
    %c0_26 = arith.constant 0 : index
    %26 = vector.load %arg20[%c8_25, %c0_26] : memref<24x128xf32, #tpu.memory_space<vmem>>, vector<8x128xf32>
    tpu.vector_store %arg20[%c8_25, %c0_26], %16 {strides = array<i32>} : memref<24x128xf32, #tpu.memory_space<vmem>>, vector<8x128xf32>,
    %27 = vector.extract_strided_slice %16 {offsets = [0, 1], sizes = [8, 127], strides = [1, 1]} : vector<8x128xf32> to vector<8x127xf32>
    %c16 = arith.constant 16 : index
    %c0_27 = arith.constant 0 : index
    %28 = vector.load %arg20[%c16, %c0_27] : memref<24x128xf32, #tpu.memory_space<vmem>>, vector<8x127xf32>
    tpu.vector_store %arg20[%c16, %c0_27], %27 {strides = array<i32>} : memref<24x128xf32, #tpu.memory_space<vmem>>, vector<8x127xf32>,
    %c0_28 = arith.constant 0 : index
    %c0_29 = arith.constant 0 : index
    %29 = vector.load %arg4[%c0_28, %c0_29] : memref<8x24xf32, #tpu.memory_space<vmem>>, vector<8x24xf32>
    %c0_30 = arith.constant 0 : index
    %c0_31 = arith.constant 0 : index
    %30 = vector.load %arg20[%c0_30, %c0_31] : memref<24x128xf32, #tpu.memory_space<vmem>>, vector<24x128xf32>
    %cst_32 = arith.constant dense<0.000000e+00> : vector<8x128xf32>
    %31 = tpu.matmul %29, %30, %cst_32 {dimension_numbers = #tpu.dot_dimension_numbers<[1], [0], [0], [1], [0, 0, 1, 1], [], []>} : vector<8x24xf32>, vector<24x128xf32>, vector<8x128xf32> -> vector<8x128xf32>
    %c0_33 = arith.constant 0 : index
    %c0_34 = arith.constant 0 : index
    %32 = vector.load %arg5[%c0_33, %c0_34] : memref<8x1xf32, #tpu.memory_space<vmem>>, vector<8x1xf32>
    %33 = vector.broadcast %32 : vector<8x1xf32> to vector<8x128xf32>
    %34 = arith.addf %31, %33 : vector<8x128xf32>
    %35 = arith.addf %34, %21 : vector<8x128xf32>
    %cst_35 = arith.constant 0.000000e+00 : f32
    %36 = vector.broadcast %cst_35 : f32 to vector<8x128xf32>
    %37 = arith.maximumf %35, %36 : vector<8x128xf32>
    %cst_36 = arith.constant 0.000000e+00 : f32
    %38 = vector.broadcast %cst_36 : f32 to vector<24x128xf32>
    %c0_37 = arith.constant 0 : index
    %c0_38 = arith.constant 0 : index
    %39 = vector.load %arg21[%c0_37, %c0_38] : memref<24x128xf32, #tpu.memory_space<vmem>>, vector<24x128xf32>
    tpu.vector_store %arg21[%c0_37, %c0_38], %38 {strides = array<i32>} : memref<24x128xf32, #tpu.memory_space<vmem>>, vector<24x128xf32>,
    %40 = vector.extract_strided_slice %37 {offsets = [0, 0], sizes = [8, 126], strides = [1, 1]} : vector<8x128xf32> to vector<8x126xf32>
    %c0_39 = arith.constant 0 : index
    %c2 = arith.constant 2 : index
    %41 = vector.load %arg21[%c0_39, %c2] : memref<24x128xf32, #tpu.memory_space<vmem>>, vector<8x126xf32>
    tpu.vector_store %arg21[%c0_39, %c2], %40 {strides = array<i32>} : memref<24x128xf32, #tpu.memory_space<vmem>>, vector<8x126xf32>,
    %c8_40 = arith.constant 8 : index
    %c0_41 = arith.constant 0 : index
    %42 = vector.load %arg21[%c8_40, %c0_41] : memref<24x128xf32, #tpu.memory_space<vmem>>, vector<8x128xf32>
    tpu.vector_store %arg21[%c8_40, %c0_41], %37 {strides = array<i32>} : memref<24x128xf32, #tpu.memory_space<vmem>>, vector<8x128xf32>,
    %43 = vector.extract_strided_slice %37 {offsets = [0, 2], sizes = [8, 126], strides = [1, 1]} : vector<8x128xf32> to vector<8x126xf32>
    %c16_42 = arith.constant 16 : index
    %c0_43 = arith.constant 0 : index
    %44 = vector.load %arg21[%c16_42, %c0_43] : memref<24x128xf32, #tpu.memory_space<vmem>>, vector<8x126xf32>
    tpu.vector_store %arg21[%c16_42, %c0_43], %43 {strides = array<i32>} : memref<24x128xf32, #tpu.memory_space<vmem>>, vector<8x126xf32>,
    %c0_44 = arith.constant 0 : index
    %c0_45 = arith.constant 0 : index
    %45 = vector.load %arg8[%c0_44, %c0_45] : memref<8x24xf32, #tpu.memory_space<vmem>>, vector<8x24xf32>
    %c0_46 = arith.constant 0 : index
    %c0_47 = arith.constant 0 : index
    %46 = vector.load %arg21[%c0_46, %c0_47] : memref<24x128xf32, #tpu.memory_space<vmem>>, vector<24x128xf32>
    %cst_48 = arith.constant dense<0.000000e+00> : vector<8x128xf32>
    %47 = tpu.matmul %45, %46, %cst_48 {dimension_numbers = #tpu.dot_dimension_numbers<[1], [0], [0], [1], [0, 0, 1, 1], [], []>} : vector<8x24xf32>, vector<24x128xf32>, vector<8x128xf32> -> vector<8x128xf32>
    %c0_49 = arith.constant 0 : index
    %c0_50 = arith.constant 0 : index
    %48 = vector.load %arg9[%c0_49, %c0_50] : memref<8x1xf32, #tpu.memory_space<vmem>>, vector<8x1xf32>
    %49 = vector.broadcast %48 : vector<8x1xf32> to vector<8x128xf32>
    %50 = arith.addf %47, %49 : vector<8x128xf32>
    %cst_51 = arith.constant 0.000000e+00 : f32
    %51 = vector.broadcast %cst_51 : f32 to vector<8x128xf32>
    %52 = arith.maximumf %50, %51 : vector<8x128xf32>
    %cst_52 = arith.constant 0.000000e+00 : f32
    %53 = vector.broadcast %cst_52 : f32 to vector<24x128xf32>
    %c0_53 = arith.constant 0 : index
    %c0_54 = arith.constant 0 : index
    %54 = vector.load %arg22[%c0_53, %c0_54] : memref<24x128xf32, #tpu.memory_space<vmem>>, vector<24x128xf32>
    tpu.vector_store %arg22[%c0_53, %c0_54], %53 {strides = array<i32>} : memref<24x128xf32, #tpu.memory_space<vmem>>, vector<24x128xf32>,
    %55 = vector.extract_strided_slice %52 {offsets = [0, 0], sizes = [8, 126], strides = [1, 1]} : vector<8x128xf32> to vector<8x126xf32>
    %c0_55 = arith.constant 0 : index
    %c2_56 = arith.constant 2 : index
    %56 = vector.load %arg22[%c0_55, %c2_56] : memref<24x128xf32, #tpu.memory_space<vmem>>, vector<8x126xf32>
    tpu.vector_store %arg22[%c0_55, %c2_56], %55 {strides = array<i32>} : memref<24x128xf32, #tpu.memory_space<vmem>>, vector<8x126xf32>,
    %c8_57 = arith.constant 8 : index
    %c0_58 = arith.constant 0 : index
    %57 = vector.load %arg22[%c8_57, %c0_58] : memref<24x128xf32, #tpu.memory_space<vmem>>, vector<8x128xf32>
    tpu.vector_store %arg22[%c8_57, %c0_58], %52 {strides = array<i32>} : memref<24x128xf32, #tpu.memory_space<vmem>>, vector<8x128xf32>,
    %58 = vector.extract_strided_slice %52 {offsets = [0, 2], sizes = [8, 126], strides = [1, 1]} : vector<8x128xf32> to vector<8x126xf32>
    %c16_59 = arith.constant 16 : index
    %c0_60 = arith.constant 0 : index
    %59 = vector.load %arg22[%c16_59, %c0_60] : memref<24x128xf32, #tpu.memory_space<vmem>>, vector<8x126xf32>
    tpu.vector_store %arg22[%c16_59, %c0_60], %58 {strides = array<i32>} : memref<24x128xf32, #tpu.memory_space<vmem>>, vector<8x126xf32>,
    %c0_61 = arith.constant 0 : index
    %c0_62 = arith.constant 0 : index
    %60 = vector.load %arg10[%c0_61, %c0_62] : memref<8x24xf32, #tpu.memory_space<vmem>>, vector<8x24xf32>
    %c0_63 = arith.constant 0 : index
    %c0_64 = arith.constant 0 : index
    %61 = vector.load %arg22[%c0_63, %c0_64] : memref<24x128xf32, #tpu.memory_space<vmem>>, vector<24x128xf32>
    %cst_65 = arith.constant dense<0.000000e+00> : vector<8x128xf32>
    %62 = tpu.matmul %60, %61, %cst_65 {dimension_numbers = #tpu.dot_dimension_numbers<[1], [0], [0], [1], [0, 0, 1, 1], [], []>} : vector<8x24xf32>, vector<24x128xf32>, vector<8x128xf32> -> vector<8x128xf32>
    %c0_66 = arith.constant 0 : index
    %c0_67 = arith.constant 0 : index
    %63 = vector.load %arg11[%c0_66, %c0_67] : memref<8x1xf32, #tpu.memory_space<vmem>>, vector<8x1xf32>
    %64 = vector.broadcast %63 : vector<8x1xf32> to vector<8x128xf32>
    %65 = arith.addf %62, %64 : vector<8x128xf32>
    %66 = arith.addf %65, %37 : vector<8x128xf32>
    %cst_68 = arith.constant 0.000000e+00 : f32
    %67 = vector.broadcast %cst_68 : f32 to vector<8x128xf32>
    %68 = arith.maximumf %66, %67 : vector<8x128xf32>
    %cst_69 = arith.constant 0.000000e+00 : f32
    %69 = vector.broadcast %cst_69 : f32 to vector<24x128xf32>
    %c0_70 = arith.constant 0 : index
    %c0_71 = arith.constant 0 : index
    %70 = vector.load %arg23[%c0_70, %c0_71] : memref<24x128xf32, #tpu.memory_space<vmem>>, vector<24x128xf32>
    tpu.vector_store %arg23[%c0_70, %c0_71], %69 {strides = array<i32>} : memref<24x128xf32, #tpu.memory_space<vmem>>, vector<24x128xf32>,
    %71 = vector.extract_strided_slice %68 {offsets = [0, 0], sizes = [8, 124], strides = [1, 1]} : vector<8x128xf32> to vector<8x124xf32>
    %c0_72 = arith.constant 0 : index
    %c4_73 = arith.constant 4 : index
    %72 = vector.load %arg23[%c0_72, %c4_73] : memref<24x128xf32, #tpu.memory_space<vmem>>, vector<8x124xf32>
    tpu.vector_store %arg23[%c0_72, %c4_73], %71 {strides = array<i32>} : memref<24x128xf32, #tpu.memory_space<vmem>>, vector<8x124xf32>,
    %c8_74 = arith.constant 8 : index
    %c0_75 = arith.constant 0 : index
    %73 = vector.load %arg23[%c8_74, %c0_75] : memref<24x128xf32, #tpu.memory_space<vmem>>, vector<8x128xf32>
    tpu.vector_store %arg23[%c8_74, %c0_75], %68 {strides = array<i32>} : memref<24x128xf32, #tpu.memory_space<vmem>>, vector<8x128xf32>,
    %74 = vector.extract_strided_slice %68 {offsets = [0, 4], sizes = [8, 124], strides = [1, 1]} : vector<8x128xf32> to vector<8x124xf32>
    %c16_76 = arith.constant 16 : index
    %c0_77 = arith.constant 0 : index
    %75 = vector.load %arg23[%c16_76, %c0_77] : memref<24x128xf32, #tpu.memory_space<vmem>>, vector<8x124xf32>
    tpu.vector_store %arg23[%c16_76, %c0_77], %74 {strides = array<i32>} : memref<24x128xf32, #tpu.memory_space<vmem>>, vector<8x124xf32>,
    %c0_78 = arith.constant 0 : index
    %c0_79 = arith.constant 0 : index
    %76 = vector.load %arg12[%c0_78, %c0_79] : memref<16x24xf32, #tpu.memory_space<vmem>>, vector<16x24xf32>
    %c0_80 = arith.constant 0 : index
    %c0_81 = arith.constant 0 : index
    %77 = vector.load %arg23[%c0_80, %c0_81] : memref<24x128xf32, #tpu.memory_space<vmem>>, vector<24x128xf32>
    %cst_82 = arith.constant dense<0.000000e+00> : vector<16x128xf32>
    %78 = tpu.matmul %76, %77, %cst_82 {dimension_numbers = #tpu.dot_dimension_numbers<[1], [0], [0], [1], [0, 0, 1, 1], [], []>} : vector<16x24xf32>, vector<24x128xf32>, vector<16x128xf32> -> vector<16x128xf32>
    %c0_83 = arith.constant 0 : index
    %c0_84 = arith.constant 0 : index
    %79 = vector.load %arg13[%c0_83, %c0_84] : memref<16x1xf32, #tpu.memory_space<vmem>>, vector<16x1xf32>
    %80 = vector.broadcast %79 : vector<16x1xf32> to vector<16x128xf32>
    %81 = arith.addf %78, %80 : vector<16x128xf32>
    %cst_85 = arith.constant 0.000000e+00 : f32
    %82 = vector.broadcast %cst_85 : f32 to vector<16x128xf32>
    %83 = arith.maximumf %81, %82 : vector<16x128xf32>
    %c0_86 = arith.constant 0 : index
    %c0_87 = arith.constant 0 : index
    %84 = vector.load %arg16[%c0_86, %c0_87] : memref<16x8xf32, #tpu.memory_space<vmem>>, vector<16x8xf32>
    %cst_88 = arith.constant dense<0.000000e+00> : vector<16x128xf32>
    %85 = tpu.matmul %84, %68, %cst_88 {dimension_numbers = #tpu.dot_dimension_numbers<[1], [0], [0], [1], [0, 0, 1, 1], [], []>} : vector<16x8xf32>, vector<8x128xf32>, vector<16x128xf32> -> vector<16x128xf32>
    %c0_89 = arith.constant 0 : index
    %c0_90 = arith.constant 0 : index
    %86 = vector.load %arg17[%c0_89, %c0_90] : memref<16x1xf32, #tpu.memory_space<vmem>>, vector<16x1xf32>
    %87 = vector.broadcast %86 : vector<16x1xf32> to vector<16x128xf32>
    %88 = arith.addf %85, %87 : vector<16x128xf32>
    %cst_91 = arith.constant 0.000000e+00 : f32
    %89 = vector.broadcast %cst_91 : f32 to vector<48x128xf32>
    %c0_92 = arith.constant 0 : index
    %c0_93 = arith.constant 0 : index
    %90 = vector.load %arg24[%c0_92, %c0_93] : memref<48x128xf32, #tpu.memory_space<vmem>>, vector<48x128xf32>
    tpu.vector_store %arg24[%c0_92, %c0_93], %89 {strides = array<i32>} : memref<48x128xf32, #tpu.memory_space<vmem>>, vector<48x128xf32>,
    %91 = vector.extract_strided_slice %83 {offsets = [0, 0], sizes = [16, 124], strides = [1, 1]} : vector<16x128xf32> to vector<16x124xf32>
    %c0_94 = arith.constant 0 : index
    %c4_95 = arith.constant 4 : index
    %92 = vector.load %arg24[%c0_94, %c4_95] : memref<48x128xf32, #tpu.memory_space<vmem>>, vector<16x124xf32>
    tpu.vector_store %arg24[%c0_94, %c4_95], %91 {strides = array<i32>} : memref<48x128xf32, #tpu.memory_space<vmem>>, vector<16x124xf32>,
    %c16_96 = arith.constant 16 : index
    %c0_97 = arith.constant 0 : index
    %93 = vector.load %arg24[%c16_96, %c0_97] : memref<48x128xf32, #tpu.memory_space<vmem>>, vector<16x128xf32>
    tpu.vector_store %arg24[%c16_96, %c0_97], %83 {strides = array<i32>} : memref<48x128xf32, #tpu.memory_space<vmem>>, vector<16x128xf32>,
    %94 = vector.extract_strided_slice %83 {offsets = [0, 4], sizes = [16, 124], strides = [1, 1]} : vector<16x128xf32> to vector<16x124xf32>
    %c32 = arith.constant 32 : index
    %c0_98 = arith.constant 0 : index
    %95 = vector.load %arg24[%c32, %c0_98] : memref<48x128xf32, #tpu.memory_space<vmem>>, vector<16x124xf32>
    tpu.vector_store %arg24[%c32, %c0_98], %94 {strides = array<i32>} : memref<48x128xf32, #tpu.memory_space<vmem>>, vector<16x124xf32>,
    %c0_99 = arith.constant 0 : index
    %c0_100 = arith.constant 0 : index
    %96 = vector.load %arg14[%c0_99, %c0_100] : memref<16x48xf32, #tpu.memory_space<vmem>>, vector<16x48xf32>
    %c0_101 = arith.constant 0 : index
    %c0_102 = arith.constant 0 : index
    %97 = vector.load %arg24[%c0_101, %c0_102] : memref<48x128xf32, #tpu.memory_space<vmem>>, vector<48x128xf32>
    %cst_103 = arith.constant dense<0.000000e+00> : vector<16x128xf32>
    %98 = tpu.matmul %96, %97, %cst_103 {dimension_numbers = #tpu.dot_dimension_numbers<[1], [0], [0], [1], [0, 0, 1, 1], [], []>} : vector<16x48xf32>, vector<48x128xf32>, vector<16x128xf32> -> vector<16x128xf32>
    %c0_104 = arith.constant 0 : index
    %c0_105 = arith.constant 0 : index
    %99 = vector.load %arg15[%c0_104, %c0_105] : memref<16x1xf32, #tpu.memory_space<vmem>>, vector<16x1xf32>
    %100 = vector.broadcast %99 : vector<16x1xf32> to vector<16x128xf32>
    %101 = arith.addf %98, %100 : vector<16x128xf32>
    %102 = arith.addf %101, %88 : vector<16x128xf32>
    %cst_106 = arith.constant 0.000000e+00 : f32
    %103 = vector.broadcast %cst_106 : f32 to vector<16x128xf32>
    %104 = arith.maximumf %102, %103 : vector<16x128xf32>
    %c0_107 = arith.constant 0 : index
    %c0_108 = arith.constant 0 : index
    %c0_109 = arith.constant 0 : index
    %105 = vector.load %arg18[%c0_107, %c0_108, %c0_109] : memref<1x16x128xf32, #tpu.memory_space<vmem>>, vector<1x16x128xf32>
    %106 = vector.shape_cast %105 : vector<1x16x128xf32> to vector<16x128xf32>
    %107 = vector.shape_cast %104 : vector<16x128xf32> to vector<1x16x128xf32>
    tpu.vector_store %arg18[%c0_107, %c0_108, %c0_109], %107 {strides = array<i32>} : memref<1x16x128xf32, #tpu.memory_space<vmem>>, vector<1x16x128xf32>,
    return
  }
  func.func @transform_0(%arg0: i32) -> (i32, i32, i32) {
    %c0_i32 = arith.constant 0 : i32
    %c0_i32_0 = arith.constant 0 : i32
    %c0_i32_1 = arith.constant 0 : i32
    return %arg0, %c0_i32, %c0_i32_0 : i32, i32, i32
  }
  func.func @transform_1(%arg0: i32) -> (i32, i32) {
    %c0_i32 = arith.constant 0 : i32
    %c0_i32_0 = arith.constant 0 : i32
    %c0_i32_1 = arith.constant 0 : i32
    return %c0_i32, %c0_i32_0 : i32, i32
  }
  func.func @transform_2(%arg0: i32) -> (i32, i32) {
    %c0_i32 = arith.constant 0 : i32
    %c0_i32_0 = arith.constant 0 : i32
    %c0_i32_1 = arith.constant 0 : i32
    return %c0_i32, %c0_i32_0 : i32, i32
  }
  func.func @transform_3(%arg0: i32) -> (i32, i32) {
    %c0_i32 = arith.constant 0 : i32
    %c0_i32_0 = arith.constant 0 : i32
    %c0_i32_1 = arith.constant 0 : i32
    return %c0_i32, %c0_i32_0 : i32, i32
  }
  func.func @transform_4(%arg0: i32) -> (i32, i32) {
    %c0_i32 = arith.constant 0 : i32
    %c0_i32_0 = arith.constant 0 : i32
    %c0_i32_1 = arith.constant 0 : i32
    return %c0_i32, %c0_i32_0 : i32, i32
  }
  func.func @transform_5(%arg0: i32) -> (i32, i32) {
    %c0_i32 = arith.constant 0 : i32
    %c0_i32_0 = arith.constant 0 : i32
    %c0_i32_1 = arith.constant 0 : i32
    return %c0_i32, %c0_i32_0 : i32, i32
  }
  func.func @transform_6(%arg0: i32) -> (i32, i32) {
    %c0_i32 = arith.constant 0 : i32
    %c0_i32_0 = arith.constant 0 : i32
    %c0_i32_1 = arith.constant 0 : i32
    return %c0_i32, %c0_i32_0 : i32, i32
  }
  func.func @transform_7(%arg0: i32) -> (i32, i32) {
    %c0_i32 = arith.constant 0 : i32
    %c0_i32_0 = arith.constant 0 : i32
    %c0_i32_1 = arith.constant 0 : i32
    return %c0_i32, %c0_i32_0 : i32, i32
  }
  func.func @transform_8(%arg0: i32) -> (i32, i32) {
    %c0_i32 = arith.constant 0 : i32
    %c0_i32_0 = arith.constant 0 : i32
    %c0_i32_1 = arith.constant 0 : i32
    return %c0_i32, %c0_i32_0 : i32, i32
  }
  func.func @transform_9(%arg0: i32) -> (i32, i32) {
    %c0_i32 = arith.constant 0 : i32
    %c0_i32_0 = arith.constant 0 : i32
    %c0_i32_1 = arith.constant 0 : i32
    return %c0_i32, %c0_i32_0 : i32, i32
  }
  func.func @transform_10(%arg0: i32) -> (i32, i32) {
    %c0_i32 = arith.constant 0 : i32
    %c0_i32_0 = arith.constant 0 : i32
    %c0_i32_1 = arith.constant 0 : i32
    return %c0_i32, %c0_i32_0 : i32, i32
  }
  func.func @transform_11(%arg0: i32) -> (i32, i32) {
    %c0_i32 = arith.constant 0 : i32
    %c0_i32_0 = arith.constant 0 : i32
    %c0_i32_1 = arith.constant 0 : i32
    return %c0_i32, %c0_i32_0 : i32, i32
  }
  func.func @transform_12(%arg0: i32) -> (i32, i32) {
    %c0_i32 = arith.constant 0 : i32
    %c0_i32_0 = arith.constant 0 : i32
    %c0_i32_1 = arith.constant 0 : i32
    return %c0_i32, %c0_i32_0 : i32, i32
  }
  func.func @transform_13(%arg0: i32) -> (i32, i32) {
    %c0_i32 = arith.constant 0 : i32
    %c0_i32_0 = arith.constant 0 : i32
    %c0_i32_1 = arith.constant 0 : i32
    return %c0_i32, %c0_i32_0 : i32, i32
  }
  func.func @transform_14(%arg0: i32) -> (i32, i32) {
    %c0_i32 = arith.constant 0 : i32
    %c0_i32_0 = arith.constant 0 : i32
    %c0_i32_1 = arith.constant 0 : i32
    return %c0_i32, %c0_i32_0 : i32, i32
  }
  func.func @transform_15(%arg0: i32) -> (i32, i32) {
    %c0_i32 = arith.constant 0 : i32
    %c0_i32_0 = arith.constant 0 : i32
    %c0_i32_1 = arith.constant 0 : i32
    return %c0_i32, %c0_i32_0 : i32, i32
  }
  func.func @transform_16(%arg0: i32) -> (i32, i32) {
    %c0_i32 = arith.constant 0 : i32
    %c0_i32_0 = arith.constant 0 : i32
    %c0_i32_1 = arith.constant 0 : i32
    return %c0_i32, %c0_i32_0 : i32, i32
  }
  func.func @transform_17(%arg0: i32) -> (i32, i32, i32) {
    %c0_i32 = arith.constant 0 : i32
    %c0_i32_0 = arith.constant 0 : i32
    %c0_i32_1 = arith.constant 0 : i32
    return %arg0, %c0_i32, %c0_i32_0 : i32, i32, i32
  }
}

</mosaic_0001>

<llo_original>
// kernel: temporal_conv_net.1
$region0: #{temporal_conv_net.1}
  #allocation0 [shape = 'u32[]', space=smem, size = 0x4, offset = 0x4, fixed_abs, tag = 'smem constant byte address 0x4 - core index']
  #allocation1 [shape = 'u32[144,128]{1,0:T(1,128)}', space=vmem, size = 0x12000, scoped, tag = 'internal scratch']
  #allocation2 [shape = 'f32[12,128]{1,0:T(8,128)}', space=vmem, size = 0x2000, scoped, tag = 'scratch operand']
  #allocation3 [shape = 'f32[24,128]{1,0:T(8,128)}', space=vmem, size = 0x3000, scoped, tag = 'scratch operand']
  #allocation4 [shape = 'f32[24,128]{1,0:T(8,128)}', space=vmem, size = 0x3000, scoped, tag = 'scratch operand']
  #allocation5 [shape = 'f32[24,128]{1,0:T(8,128)}', space=vmem, size = 0x3000, scoped, tag = 'scratch operand']
  #allocation6 [shape = 'f32[24,128]{1,0:T(8,128)}', space=vmem, size = 0x3000, scoped, tag = 'scratch operand']
  #allocation7 [shape = 'f32[48,128]{1,0:T(8,128)}', space=vmem, size = 0x6000, scoped, tag = 'scratch operand']
  %s0 = inlined_call_operand.vmem [shape: f32[2,4,128], index: 0, kind: input, shape index: {}]
  %s1 = inlined_call_operand.vmem [shape: f32[8,12], index: 1, kind: input, shape index: {}]
  %s2 = inlined_call_operand.vmem [shape: f32[8,1], index: 2, kind: input, shape index: {}]
  %s3 = inlined_call_operand.vmem [shape: f32[8,24], index: 3, kind: input, shape index: {}]
  %s4 = inlined_call_operand.vmem [shape: f32[8,1], index: 4, kind: input, shape index: {}]
  %s5 = inlined_call_operand.vmem [shape: f32[8,4], index: 5, kind: input, shape index: {}]
  %s6 = inlined_call_operand.vmem [shape: f32[8,1], index: 6, kind: input, shape index: {}]
  %s7 = inlined_call_operand.vmem [shape: f32[8,24], index: 7, kind: input, shape index: {}]
  %s8 = inlined_call_operand.vmem [shape: f32[8,1], index: 8, kind: input, shape index: {}]
  %s9 = inlined_call_operand.vmem [shape: f32[8,24], index: 9, kind: input, shape index: {}]
  %s10 = inlined_call_operand.vmem [shape: f32[8,1], index: 10, kind: input, shape index: {}]
  %s11 = inlined_call_operand.vmem [shape: f32[16,24], index: 11, kind: input, shape index: {}]
  %s12 = inlined_call_operand.vmem [shape: f32[16,1], index: 12, kind: input, shape index: {}]
  %s13 = inlined_call_operand.vmem [shape: f32[16,48], index: 13, kind: input, shape index: {}]
  %s14 = inlined_call_operand.vmem [shape: f32[16,1], index: 14, kind: input, shape index: {}]
  %s15 = inlined_call_operand.vmem [shape: f32[16,8], index: 15, kind: input, shape index: {}]
  %s16 = inlined_call_operand.vmem [shape: f32[16,1], index: 16, kind: input, shape index: {}]
  %s17 = inlined_call_operand.hbm [shape: f32[2,16,128], index: 17, kind: output, shape index: {}]
  %s18 = sld [smem:[#allocation0]]
  $region101: #{temporal_conv_net.1} parent=0
    _
  %s20 = ssub.s32 1, %s18
  %s21 = scalar_select 0, %s20, %s18
  $region1: #{temporal_conv_net.1} parent=0
    #allocation8 [shape = 'u8[16384]{0}', space=vmem, size = 0x4000, scoped, tag = 'output window, operand 0']
    #allocation9 [shape = 's32[2]{0}', space=sflag, size = 0x8, scoped, tag = 'scoped memory for temporal_conv_net.1']
    %22 = vsyncpa [#allocation9], 0
    %s23 = scalar_lea.sflag [#allocation9], 1
    %24 = vsyncpa %s23, 0
    loop: start=0, step=1, limit=4
    $region2: #{temporal_conv_net.1} parent=1 // loop_pre_header
      _
    $region3: #{temporal_conv_net.1} parent=1 // loop_header
      %s26 = sphi 0, %s30
      %p27 = scmp.ge.s32.totalorder %s26, 4
      %s36 = sphi 0, %s38
      %s39 = sphi 0, %s36
      %s40 = sphi 0, %s39
      %s56 = sphi 0, %s40
      %s60 = sphi 0, %s60
      %s62 = sphi 0, %s60
      %s63 = sphi 0, %s62
      %s77 = sphi 0, %s63
      %s81 = sphi 0, %s81
      %s83 = sphi 0, %s81
      %s84 = sphi 0, %s83
      %s98 = sphi 0, %s84
      %s102 = sphi 0, %s102
      %s104 = sphi 0, %s102
      %s105 = sphi 0, %s104
      %s119 = sphi 0, %s105
      %s123 = sphi 0, %s123
      %s125 = sphi 0, %s123
      %s126 = sphi 0, %s125
      %s140 = sphi 0, %s126
      %s144 = sphi 0, %s144
      %s146 = sphi 0, %s144
      %s147 = sphi 0, %s146
      %s161 = sphi 0, %s147
      %s165 = sphi 0, %s165
      %s167 = sphi 0, %s165
      %s168 = sphi 0, %s167
      %s182 = sphi 0, %s168
      %s186 = sphi 0, %s186
      %s188 = sphi 0, %s186
      %s189 = sphi 0, %s188
      %s203 = sphi 0, %s189
      %s207 = sphi 0, %s207
      %s209 = sphi 0, %s207
      %s210 = sphi 0, %s209
      %s224 = sphi 0, %s210
      %s228 = sphi 0, %s228
      %s230 = sphi 0, %s228
      %s231 = sphi 0, %s230
      %s245 = sphi 0, %s231
      %s249 = sphi 0, %s249
      %s251 = sphi 0, %s249
      %s252 = sphi 0, %s251
      %s266 = sphi 0, %s252
      %s270 = sphi 0, %s270
      %s272 = sphi 0, %s270
      %s273 = sphi 0, %s272
      %s287 = sphi 0, %s273
      %s291 = sphi 0, %s291
      %s293 = sphi 0, %s291
      %s294 = sphi 0, %s293
      %s308 = sphi 0, %s294
      %s312 = sphi 0, %s312
      %s314 = sphi 0, %s312
      %s315 = sphi 0, %s314
      %s329 = sphi 0, %s315
      %s333 = sphi 0, %s333
      %s335 = sphi 0, %s333
      %s336 = sphi 0, %s335
      %s350 = sphi 0, %s336
      %s354 = sphi 0, %s354
      %s356 = sphi 0, %s354
      %s357 = sphi 0, %s356
      %s371 = sphi 0, %s357
      %s375 = sphi 0, %s375
      %s377 = sphi 0, %s375
      %s378 = sphi 0, %s377
      %s392 = sphi 0, %s378
      %s398 = sphi 0, %s400
      %s401 = sphi 0, %s398
      %s402 = sphi 0, %s401
      %s418 = sphi 0, %s402
    $region4: #{temporal_conv_net.1} parent=1 // loop_header_branch
      %29 = sbr.rel (%p27) target = $region8
    $region5: #{temporal_conv_net.1} parent=1 // loop_body
      %s31 = ssub.s32 %s26, 1
      %s32 = ssub.s32 %s26, 2
      %s33 = sadd.s32 %s26, 1
      %s34 = ssub.s32 %s26, %s33
      %p35 = scmp.eq.s32.totalorder %s34, 0
      %s37 = sadd.s32 %s36, 1
      %s38 = scalar_select %p35, %s36, %s37
      %p41 = pneg %p35
      %p42 = scmp.eq.s32.totalorder %s26, 1
      %p43 = por %p41, %p42
      %p44 = scmp.ne.s32.totalorder %s36, %s39
      %p45 = scmp.eq.s32.totalorder %s26, 0
      %p46 = por %p44, %p45
      %p47 = scmp.ne.s32.totalorder %s36, %s39
      %p48 = scmp.eq.s32.totalorder %s31, 1
      %p49 = por %p47, %p48
      %p50 = scmp.ne.s32.totalorder %s39, %s40
      %p51 = scmp.eq.s32.totalorder %s31, 0
      %p52 = por %p50, %p51
      %p53 = scmp.ne.s32.totalorder %s39, %s40
      %p54 = scmp.eq.s32.totalorder %s32, 1
      %p55 = por %p53, %p54
      %p57 = scmp.ne.s32.totalorder %s40, %s56
      %p58 = scmp.eq.s32.totalorder %s32, 0
      %p59 = por %p57, %p58
      %s61 = sadd.s32 %s60, 1
      %p64 = scmp.eq.s32.totalorder %s26, 1
      %p65 = scmp.ne.s32.totalorder %s60, %s62
      %p66 = scmp.eq.s32.totalorder %s26, 0
      %p67 = por %p65, %p66
      %p68 = scmp.ne.s32.totalorder %s60, %s62
      %p69 = scmp.eq.s32.totalorder %s31, 1
      %p70 = por %p68, %p69
      %p71 = scmp.ne.s32.totalorder %s62, %s63
      %p72 = scmp.eq.s32.totalorder %s31, 0
      %p73 = por %p71, %p72
      %p74 = scmp.ne.s32.totalorder %s62, %s63
      %p75 = scmp.eq.s32.totalorder %s32, 1
      %p76 = por %p74, %p75
      %p78 = scmp.ne.s32.totalorder %s63, %s77
      %p79 = scmp.eq.s32.totalorder %s32, 0
      %p80 = por %p78, %p79
      %s82 = sadd.s32 %s81, 1
      %p85 = scmp.eq.s32.totalorder %s26, 1
      %p86 = scmp.ne.s32.totalorder %s81, %s83
      %p87 = scmp.eq.s32.totalorder %s26, 0
      %p88 = por %p86, %p87
      %p89 = scmp.ne.s32.totalorder %s81, %s83
      %p90 = scmp.eq.s32.totalorder %s31, 1
      %p91 = por %p89, %p90
      %p92 = scmp.ne.s32.totalorder %s83, %s84
      %p93 = scmp.eq.s32.totalorder %s31, 0
      %p94 = por %p92, %p93
      %p95 = scmp.ne.s32.totalorder %s83, %s84
      %p96 = scmp.eq.s32.totalorder %s32, 1
      %p97 = por %p95, %p96
      %p99 = scmp.ne.s32.totalorder %s84, %s98
      %p100 = scmp.eq.s32.totalorder %s32, 0
      %p101 = por %p99, %p100
      %s103 = sadd.s32 %s102, 1
      %p106 = scmp.eq.s32.totalorder %s26, 1
      %p107 = scmp.ne.s32.totalorder %s102, %s104
      %p108 = scmp.eq.s32.totalorder %s26, 0
      %p109 = por %p107, %p108
      %p110 = scmp.ne.s32.totalorder %s102, %s104
      %p111 = scmp.eq.s32.totalorder %s31, 1
      %p112 = por %p110, %p111
      %p113 = scmp.ne.s32.totalorder %s104, %s105
      %p114 = scmp.eq.s32.totalorder %s31, 0
      %p115 = por %p113, %p114
      %p116 = scmp.ne.s32.totalorder %s104, %s105
      %p117 = scmp.eq.s32.totalorder %s32, 1
      %p118 = por %p116, %p117
      %p120 = scmp.ne.s32.totalorder %s105, %s119
      %p121 = scmp.eq.s32.totalorder %s32, 0
      %p122 = por %p120, %p121
      %s124 = sadd.s32 %s123, 1
      %p127 = scmp.eq.s32.totalorder %s26, 1
      %p128 = scmp.ne.s32.totalorder %s123, %s125
      %p129 = scmp.eq.s32.totalorder %s26, 0
      %p130 = por %p128, %p129
      %p131 = scmp.ne.s32.totalorder %s123, %s125
      %p132 = scmp.eq.s32.totalorder %s31, 1
      %p133 = por %p131, %p132
      %p134 = scmp.ne.s32.totalorder %s125, %s126
      %p135 = scmp.eq.s32.totalorder %s31, 0
      %p136 = por %p134, %p135
      %p137 = scmp.ne.s32.totalorder %s125, %s126
      %p138 = scmp.eq.s32.totalorder %s32, 1
      %p139 = por %p137, %p138
      %p141 = scmp.ne.s32.totalorder %s126, %s140
      %p142 = scmp.eq.s32.totalorder %s32, 0
      %p143 = por %p141, %p142
      %s145 = sadd.s32 %s144, 1
      %p148 = scmp.eq.s32.totalorder %s26, 1
      %p149 = scmp.ne.s32.totalorder %s144, %s146
      %p150 = scmp.eq.s32.totalorder %s26, 0
      %p151 = por %p149, %p150
      %p152 = scmp.ne.s32.totalorder %s144, %s146
      %p153 = scmp.eq.s32.totalorder %s31, 1
      %p154 = por %p152, %p153
      %p155 = scmp.ne.s32.totalorder %s146, %s147
      %p156 = scmp.eq.s32.totalorder %s31, 0
      %p157 = por %p155, %p156
      %p158 = scmp.ne.s32.totalorder %s146, %s147
      %p159 = scmp.eq.s32.totalorder %s32, 1
      %p160 = por %p158, %p159
      %p162 = scmp.ne.s32.totalorder %s147, %s161
      %p163 = scmp.eq.s32.totalorder %s32, 0
      %p164 = por %p162, %p163
      %s166 = sadd.s32 %s165, 1
      %p169 = scmp.eq.s32.totalorder %s26, 1
      %p170 = scmp.ne.s32.totalorder %s165, %s167
      %p171 = scmp.eq.s32.totalorder %s26, 0
      %p172 = por %p170, %p171
      %p173 = scmp.ne.s32.totalorder %s165, %s167
      %p174 = scmp.eq.s32.totalorder %s31, 1
      %p175 = por %p173, %p174
      %p176 = scmp.ne.s32.totalorder %s167, %s168
      %p177 = scmp.eq.s32.totalorder %s31, 0
      %p178 = por %p176, %p177
      %p179 = scmp.ne.s32.totalorder %s167, %s168
      %p180 = scmp.eq.s32.totalorder %s32, 1
      %p181 = por %p179, %p180
      %p183 = scmp.ne.s32.totalorder %s168, %s182
      %p184 = scmp.eq.s32.totalorder %s32, 0
      %p185 = por %p183, %p184
      %s187 = sadd.s32 %s186, 1
      %p190 = scmp.eq.s32.totalorder %s26, 1
      %p191 = scmp.ne.s32.totalorder %s186, %s188
      %p192 = scmp.eq.s32.totalorder %s26, 0
      %p193 = por %p191, %p192
      %p194 = scmp.ne.s32.totalorder %s186, %s188
      %p195 = scmp.eq.s32.totalorder %s31, 1
      %p196 = por %p194, %p195
      %p197 = scmp.ne.s32.totalorder %s188, %s189
      %p198 = scmp.eq.s32.totalorder %s31, 0
      %p199 = por %p197, %p198
      %p200 = scmp.ne.s32.totalorder %s188, %s189
      %p201 = scmp.eq.s32.totalorder %s32, 1
      %p202 = por %p200, %p201
      %p204 = scmp.ne.s32.totalorder %s189, %s203
      %p205 = scmp.eq.s32.totalorder %s32, 0
      %p206 = por %p204, %p205
      %s208 = sadd.s32 %s207, 1
      %p211 = scmp.eq.s32.totalorder %s26, 1
      %p212 = scmp.ne.s32.totalorder %s207, %s209
      %p213 = scmp.eq.s32.totalorder %s26, 0
      %p214 = por %p212, %p213
      %p215 = scmp.ne.s32.totalorder %s207, %s209
      %p216 = scmp.eq.s32.totalorder %s31, 1
      %p217 = por %p215, %p216
      %p218 = scmp.ne.s32.totalorder %s209, %s210
      %p219 = scmp.eq.s32.totalorder %s31, 0
      %p220 = por %p218, %p219
      %p221 = scmp.ne.s32.totalorder %s209, %s210
      %p222 = scmp.eq.s32.totalorder %s32, 1
      %p223 = por %p221, %p222
      %p225 = scmp.ne.s32.totalorder %s210, %s224
      %p226 = scmp.eq.s32.totalorder %s32, 0
      %p227 = por %p225, %p226
      %s229 = sadd.s32 %s228, 1
      %p232 = scmp.eq.s32.totalorder %s26, 1
      %p233 = scmp.ne.s32.totalorder %s228, %s230
      %p234 = scmp.eq.s32.totalorder %s26, 0
      %p235 = por %p233, %p234
      %p236 = scmp.ne.s32.totalorder %s228, %s230
      %p237 = scmp.eq.s32.totalorder %s31, 1
      %p238 = por %p236, %p237
      %p239 = scmp.ne.s32.totalorder %s230, %s231
      %p240 = scmp.eq.s32.totalorder %s31, 0
      %p241 = por %p239, %p240
      %p242 = scmp.ne.s32.totalorder %s230, %s231
      %p243 = scmp.eq.s32.totalorder %s32, 1
      %p244 = por %p242, %p243
      %p246 = scmp.ne.s32.totalorder %s231, %s245
      %p247 = scmp.eq.s32.totalorder %s32, 0
      %p248 = por %p246, %p247
      %s250 = sadd.s32 %s249, 1
      %p253 = scmp.eq.s32.totalorder %s26, 1
      %p254 = scmp.ne.s32.totalorder %s249, %s251
      %p255 = scmp.eq.s32.totalorder %s26, 0
      %p256 = por %p254, %p255
      %p257 = scmp.ne.s32.totalorder %s249, %s251
      %p258 = scmp.eq.s32.totalorder %s31, 1
      %p259 = por %p257, %p258
      %p260 = scmp.ne.s32.totalorder %s251, %s252
      %p261 = scmp.eq.s32.totalorder %s31, 0
      %p262 = por %p260, %p261
      %p263 = scmp.ne.s32.totalorder %s251, %s252
      %p264 = scmp.eq.s32.totalorder %s32, 1
      %p265 = por %p263, %p264
      %p267 = scmp.ne.s32.totalorder %s252, %s266
      %p268 = scmp.eq.s32.totalorder %s32, 0
      %p269 = por %p267, %p268
      %s271 = sadd.s32 %s270, 1
      %p274 = scmp.eq.s32.totalorder %s26, 1
      %p275 = scmp.ne.s32.totalorder %s270, %s272
      %p276 = scmp.eq.s32.totalorder %s26, 0
      %p277 = por %p275, %p276
      %p278 = scmp.ne.s32.totalorder %s270, %s272
      %p279 = scmp.eq.s32.totalorder %s31, 1
      %p280 = por %p278, %p279
      %p281 = scmp.ne.s32.totalorder %s272, %s273
      %p282 = scmp.eq.s32.totalorder %s31, 0
      %p283 = por %p281, %p282
      %p284 = scmp.ne.s32.totalorder %s272, %s273
      %p285 = scmp.eq.s32.totalorder %s32, 1
      %p286 = por %p284, %p285
      %p288 = scmp.ne.s32.totalorder %s273, %s287
      %p289 = scmp.eq.s32.totalorder %s32, 0
      %p290 = por %p288, %p289
      %s292 = sadd.s32 %s291, 1
      %p295 = scmp.eq.s32.totalorder %s26, 1
      %p296 = scmp.ne.s32.totalorder %s291, %s293
      %p297 = scmp.eq.s32.totalorder %s26, 0
      %p298 = por %p296, %p297
      %p299 = scmp.ne.s32.totalorder %s291, %s293
      %p300 = scmp.eq.s32.totalorder %s31, 1
      %p301 = por %p299, %p300
      %p302 = scmp.ne.s32.totalorder %s293, %s294
      %p303 = scmp.eq.s32.totalorder %s31, 0
      %p304 = por %p302, %p303
      %p305 = scmp.ne.s32.totalorder %s293, %s294
      %p306 = scmp.eq.s32.totalorder %s32, 1
      %p307 = por %p305, %p306
      %p309 = scmp.ne.s32.totalorder %s294, %s308
      %p310 = scmp.eq.s32.totalorder %s32, 0
      %p311 = por %p309, %p310
      %s313 = sadd.s32 %s312, 1
      %p316 = scmp.eq.s32.totalorder %s26, 1
      %p317 = scmp.ne.s32.totalorder %s312, %s314
      %p318 = scmp.eq.s32.totalorder %s26, 0
      %p319 = por %p317, %p318
      %p320 = scmp.ne.s32.totalorder %s312, %s314
      %p321 = scmp.eq.s32.totalorder %s31, 1
      %p322 = por %p320, %p321
      %p323 = scmp.ne.s32.totalorder %s314, %s315
      %p324 = scmp.eq.s32.totalorder %s31, 0
      %p325 = por %p323, %p324
      %p326 = scmp.ne.s32.totalorder %s314, %s315
      %p327 = scmp.eq.s32.totalorder %s32, 1
      %p328 = por %p326, %p327
      %p330 = scmp.ne.s32.totalorder %s315, %s329
      %p331 = scmp.eq.s32.totalorder %s32, 0
      %p332 = por %p330, %p331
      %s334 = sadd.s32 %s333, 1
      %p337 = scmp.eq.s32.totalorder %s26, 1
      %p338 = scmp.ne.s32.totalorder %s333, %s335
      %p339 = scmp.eq.s32.totalorder %s26, 0
      %p340 = por %p338, %p339
      %p341 = scmp.ne.s32.totalorder %s333, %s335
      %p342 = scmp.eq.s32.totalorder %s31, 1
      %p343 = por %p341, %p342
      %p344 = scmp.ne.s32.totalorder %s335, %s336
      %p345 = scmp.eq.s32.totalorder %s31, 0
      %p346 = por %p344, %p345
      %p347 = scmp.ne.s32.totalorder %s335, %s336
      %p348 = scmp.eq.s32.totalorder %s32, 1
      %p349 = por %p347, %p348
      %p351 = scmp.ne.s32.totalorder %s336, %s350
      %p352 = scmp.eq.s32.totalorder %s32, 0
      %p353 = por %p351, %p352
      %s355 = sadd.s32 %s354, 1
      %p358 = scmp.eq.s32.totalorder %s26, 1
      %p359 = scmp.ne.s32.totalorder %s354, %s356
      %p360 = scmp.eq.s32.totalorder %s26, 0
      %p361 = por %p359, %p360
      %p362 = scmp.ne.s32.totalorder %s354, %s356
      %p363 = scmp.eq.s32.totalorder %s31, 1
      %p364 = por %p362, %p363
      %p365 = scmp.ne.s32.totalorder %s356, %s357
      %p366 = scmp.eq.s32.totalorder %s31, 0
      %p367 = por %p365, %p366
      %p368 = scmp.ne.s32.totalorder %s356, %s357
      %p369 = scmp.eq.s32.totalorder %s32, 1
      %p370 = por %p368, %p369
      %p372 = scmp.ne.s32.totalorder %s357, %s371
      %p373 = scmp.eq.s32.totalorder %s32, 0
      %p374 = por %p372, %p373
      %s376 = sadd.s32 %s375, 1
      %p379 = scmp.eq.s32.totalorder %s26, 1
      %p380 = scmp.ne.s32.totalorder %s375, %s377
      %p381 = scmp.eq.s32.totalorder %s26, 0
      %p382 = por %p380, %p381
      %p383 = scmp.ne.s32.totalorder %s375, %s377
      %p384 = scmp.eq.s32.totalorder %s31, 1
      %p385 = por %p383, %p384
      %p386 = scmp.ne.s32.totalorder %s377, %s378
      %p387 = scmp.eq.s32.totalorder %s31, 0
      %p388 = por %p386, %p387
      %p389 = scmp.ne.s32.totalorder %s377, %s378
      %p390 = scmp.eq.s32.totalorder %s32, 1
      %p391 = por %p389, %p390
      %p393 = scmp.ne.s32.totalorder %s378, %s392
      %p394 = scmp.eq.s32.totalorder %s32, 0
      %p395 = por %p393, %p394
      %s396 = ssub.s32 %s26, %s33
      %p397 = scmp.eq.s32.totalorder %s396, 0
      %s399 = sadd.s32 %s398, 1
      %s400 = scalar_select %p397, %s398, %s399
      %p403 = pneg %p397
      %p404 = scmp.eq.s32.totalorder %s26, 1
      %p405 = por %p403, %p404
      %p406 = scmp.ne.s32.totalorder %s398, %s401
      %p407 = scmp.eq.s32.totalorder %s26, 0
      %p408 = por %p406, %p407
      %p409 = scmp.ne.s32.totalorder %s398, %s401
      %p410 = scmp.eq.s32.totalorder %s31, 1
      %p411 = por %p409, %p410
      %p412 = scmp.ne.s32.totalorder %s401, %s402
      %p413 = scmp.eq.s32.totalorder %s31, 0
      %p414 = por %p412, %p413
      %p415 = scmp.ne.s32.totalorder %s401, %s402
      %p416 = scmp.eq.s32.totalorder %s32, 1
      %p417 = por %p415, %p416
      %p419 = scmp.ne.s32.totalorder %s402, %s418
      %p420 = scmp.eq.s32.totalorder %s32, 0
      %p421 = por %p419, %p420
      %p422 = scmp.le.s32.totalorder 1, %s26
      %p423 = scmp.lt.s32.totalorder %s26, 3
      %p424 = pnand %p422, %p423
      %p425 = pneg %p424
      // Predicated region
      $region9: #{temporal_conv_net.1} parent=5 // pred_check
        _
      $region10: #{temporal_conv_net.1} parent=5 // pred_check_branch
        %427 = sbr.rel (%p424) target = $region12
      $region11: #{temporal_conv_net.1} parent=5 // pred_region
        %s428 = ssub.s32 %s26, 1
        // Predicated region
        $region13: #{temporal_conv_net.1} parent=11 // pred_check
          %p429 = pneg %p73
        $region14: #{temporal_conv_net.1} parent=11 // pred_check_branch
          %431 = sbr.rel (%p429) target = $region16
        $region15: #{temporal_conv_net.1} parent=11 // pred_region
          _
        $region16: #{temporal_conv_net.1} parent=11 // pred_fallthru
          _
        // Predicated region
        $region17: #{temporal_conv_net.1} parent=11 // pred_check
          %p432 = pneg %p94
        $region18: #{temporal_conv_net.1} parent=11 // pred_check_branch
          %434 = sbr.rel (%p432) target = $region20
        $region19: #{temporal_conv_net.1} parent=11 // pred_region
          _
        $region20: #{temporal_conv_net.1} parent=11 // pred_fallthru
          _
        // Predicated region
        $region21: #{temporal_conv_net.1} parent=11 // pred_check
          %p435 = pneg %p115
        $region22: #{temporal_conv_net.1} parent=11 // pred_check_branch
          %437 = sbr.rel (%p435) target = $region24
        $region23: #{temporal_conv_net.1} parent=11 // pred_region
          _
        $region24: #{temporal_conv_net.1} parent=11 // pred_fallthru
          _
        // Predicated region
        $region25: #{temporal_conv_net.1} parent=11 // pred_check
          %p438 = pneg %p136
        $region26: #{temporal_conv_net.1} parent=11 // pred_check_branch
          %440 = sbr.rel (%p438) target = $region28
        $region27: #{temporal_conv_net.1} parent=11 // pred_region
          _
        $region28: #{temporal_conv_net.1} parent=11 // pred_fallthru
          _
        // Predicated region
        $region29: #{temporal_conv_net.1} parent=11 // pred_check
          %p441 = pneg %p157
        $region30: #{temporal_conv_net.1} parent=11 // pred_check_branch
          %443 = sbr.rel (%p441) target = $region32
        $region31: #{temporal_conv_net.1} parent=11 // pred_region
          _
        $region32: #{temporal_conv_net.1} parent=11 // pred_fallthru
          _
        // Predicated region
        $region33: #{temporal_conv_net.1} parent=11 // pred_check
          %p444 = pneg %p178
        $region34: #{temporal_conv_net.1} parent=11 // pred_check_branch
          %446 = sbr.rel (%p444) target = $region36
        $region35: #{temporal_conv_net.1} parent=11 // pred_region
          _
        $region36: #{temporal_conv_net.1} parent=11 // pred_fallthru
          _
        // Predicated region
        $region37: #{temporal_conv_net.1} parent=11 // pred_check
          %p447 = pneg %p199
        $region38: #{temporal_conv_net.1} parent=11 // pred_check_branch
          %449 = sbr.rel (%p447) target = $region40
        $region39: #{temporal_conv_net.1} parent=11 // pred_region
          _
        $region40: #{temporal_conv_net.1} parent=11 // pred_fallthru
          _
        // Predicated region
        $region41: #{temporal_conv_net.1} parent=11 // pred_check
          %p450 = pneg %p220
        $region42: #{temporal_conv_net.1} parent=11 // pred_check_branch
          %452 = sbr.rel (%p450) target = $region44
        $region43: #{temporal_conv_net.1} parent=11 // pred_region
          _
        $region44: #{temporal_conv_net.1} parent=11 // pred_fallthru
          _
        // Predicated region
        $region45: #{temporal_conv_net.1} parent=11 // pred_check
          %p453 = pneg %p241
        $region46: #{temporal_conv_net.1} parent=11 // pred_check_branch
          %455 = sbr.rel (%p453) target = $region48
        $region47: #{temporal_conv_net.1} parent=11 // pred_region
          _
        $region48: #{temporal_conv_net.1} parent=11 // pred_fallthru
          _
        // Predicated region
        $region49: #{temporal_conv_net.1} parent=11 // pred_check
          %p456 = pneg %p262
        $region50: #{temporal_conv_net.1} parent=11 // pred_check_branch
          %458 = sbr.rel (%p456) target = $region52
        $region51: #{temporal_conv_net.1} parent=11 // pred_region
          _
        $region52: #{temporal_conv_net.1} parent=11 // pred_fallthru
          _
        // Predicated region
        $region53: #{temporal_conv_net.1} parent=11 // pred_check
          %p459 = pneg %p283
        $region54: #{temporal_conv_net.1} parent=11 // pred_check_branch
          %461 = sbr.rel (%p459) target = $region56
        $region55: #{temporal_conv_net.1} parent=11 // pred_region
          _
        $region56: #{temporal_conv_net.1} parent=11 // pred_fallthru
          _
        // Predicated region
        $region57: #{temporal_conv_net.1} parent=11 // pred_check
          %p462 = pneg %p304
        $region58: #{temporal_conv_net.1} parent=11 // pred_check_branch
          %464 = sbr.rel (%p462) target = $region60
        $region59: #{temporal_conv_net.1} parent=11 // pred_region
          _
        $region60: #{temporal_conv_net.1} parent=11 // pred_fallthru
          _
        // Predicated region
        $region61: #{temporal_conv_net.1} parent=11 // pred_check
          %p465 = pneg %p325
        $region62: #{temporal_conv_net.1} parent=11 // pred_check_branch
          %467 = sbr.rel (%p465) target = $region64
        $region63: #{temporal_conv_net.1} parent=11 // pred_region
          _
        $region64: #{temporal_conv_net.1} parent=11 // pred_fallthru
          _
        // Predicated region
        $region65: #{temporal_conv_net.1} parent=11 // pred_check
          %p468 = pneg %p346
        $region66: #{temporal_conv_net.1} parent=11 // pred_check_branch
          %470 = sbr.rel (%p468) target = $region68
        $region67: #{temporal_conv_net.1} parent=11 // pred_region
          _
        $region68: #{temporal_conv_net.1} parent=11 // pred_fallthru
          _
        // Predicated region
        $region69: #{temporal_conv_net.1} parent=11 // pred_check
          %p471 = pneg %p367
        $region70: #{temporal_conv_net.1} parent=11 // pred_check_branch
          %473 = sbr.rel (%p471) target = $region72
        $region71: #{temporal_conv_net.1} parent=11 // pred_region
          _
        $region72: #{temporal_conv_net.1} parent=11 // pred_fallthru
          _
        // Predicated region
        $region73: #{temporal_conv_net.1} parent=11 // pred_check
          %p474 = pneg %p388
        $region74: #{temporal_conv_net.1} parent=11 // pred_check_branch
          %476 = sbr.rel (%p474) target = $region76
        $region75: #{temporal_conv_net.1} parent=11 // pred_region
          _
        $region76: #{temporal_conv_net.1} parent=11 // pred_fallthru
          _
      $region12: #{temporal_conv_net.1} parent=5 // pred_fallthru
        _
      %p477 = scmp.lt.s32.totalorder %s26, 2
      // Predicated region
      $region77: #{temporal_conv_net.1} parent=5 // pred_check
        %p478 = pneg %p477
      $region78: #{temporal_conv_net.1} parent=5 // pred_check_branch
        %480 = sbr.rel (%p478) target = $region80
      $region79: #{temporal_conv_net.1} parent=5 // pred_region
        // Predicated region
        $region81: #{temporal_conv_net.1} parent=79 // pred_check
          %p481 = pneg %p46
        $region82: #{temporal_conv_net.1} parent=79 // pred_check_branch
          %483 = sbr.rel (%p481) target = $region84
        $region83: #{temporal_conv_net.1} parent=79 // pred_region
          %p484 = scmp.lt.s32.totalorder %s26, 1
          %s485 = scalar_select %p484, %s26, 1
          %s486 = smul.addr %s485, 4
          %s487 = scalar_lea.vmem %s0, %s486
        $region84: #{temporal_conv_net.1} parent=79 // pred_fallthru
          _
      $region80: #{temporal_conv_net.1} parent=5 // pred_fallthru
        _
      %p488 = scmp.le.s32.totalorder 1, %s26
      %p489 = scmp.lt.s32.totalorder %s26, 3
      %p490 = pnand %p488, %p489
      %p491 = pneg %p490
      // Predicated region
      $region85: #{temporal_conv_net.1} parent=5 // pred_check
        _
      $region86: #{temporal_conv_net.1} parent=5 // pred_check_branch
        %493 = sbr.rel (%p490) target = $region88
      $region87: #{temporal_conv_net.1} parent=5 // pred_region
        %s494 = ssub.s32 %s26, 1
        %p495 = scmp.lt.s32.totalorder %s31, 1
        %s496 = scalar_select %p495, %s31, 1
        %s497 = smul.addr %s496, 4
        %s498 = scalar_lea.vmem %s0, %s497
        %p499 = pneg %p52
        %p500 = pneg %p49
        %p501 = pneg %p73
        %p502 = pneg %p70
        %p503 = pneg %p94
        %p504 = pneg %p91
        %p505 = pneg %p115
        %p506 = pneg %p112
        %p507 = pneg %p136
        %p508 = pneg %p133
        %p509 = pneg %p157
        %p510 = pneg %p154
        %p511 = pneg %p178
        %p512 = pneg %p175
        %p513 = pneg %p199
        %p514 = pneg %p196
        %p515 = pneg %p220
        %p516 = pneg %p217
        %p517 = pneg %p241
        %p518 = pneg %p238
        %p519 = pneg %p262
        %p520 = pneg %p259
        %p521 = pneg %p283
        %p522 = pneg %p280
        %p523 = pneg %p304
        %p524 = pneg %p301
        %p525 = pneg %p325
        %p526 = pneg %p322
        %p527 = pneg %p346
        %p528 = pneg %p343
        %p529 = pneg %p367
        %p530 = pneg %p364
        %p531 = pneg %p388
        %p532 = pneg %p385
        %p533 = pneg %p414
        %p534 = pneg %p411
        %s535 = sand.u32 %s401, 1
        %s536 = scalar_lea.sflag [#allocation9], %s535
        %s537 = sand.u32 %s401, 1
        %s538 = smul.addr %s537, 16
        %s539 = scalar_lea.vmem [#allocation8], %s538
        %p540 = scmp.lt.s32.totalorder %s31, 1
        %s541 = scalar_select %p540, %s31, 1
        %s542 = smul.addr %s541, 4
        %s543 = scalar_lea.vmem %s0, %s542
        %v544 = vld [vmem:[%s543] sm:$0xf]
        %545 = vst [vmem:[#allocation2] sm:$0xff] 0.0
        %546 = vst [vmem:[#allocation2 + $0x8] sm:$0xf] 0.0
        %548 = vrot.lane.b32.xlu0 %v544, 1
        %v549 = vpop.permute.xlu0 %548
        %vm551 = vcmask 1043464
        %552 = vst.msk [vmem:[#allocation2] sm:$0xf] %vm551, %v549
        %553 = vst [vmem:[#allocation2 + $0x4] sm:$0xf] %v544
        %554 = vrot.lane.b32.xlu0 %v544, 127
        %v555 = vpop.permute.xlu0 %554
        %vm557 = vcmask 1035264
        %558 = vst.msk [vmem:[#allocation2 + $0x8] sm:$0xf] %vm557, %v555
        %v559 = vld [vmem:[%s1] sm:$0xff]
        %v560 = vld [vmem:[#allocation2] sm:$0xff]
        %v561 = vld [vmem:[#allocation2 + $0x8] sm:$0xf]
        %v562 = vld [vmem:[%s2] sm:$0xff]
        %564 = vset.pattern.permute.xlu0 0
        %565 = vperm.xlu0 %564, %v562
        %v566 = vpop.permute.xlu0 %565
        %vm568 = vcmask 97280
        %v570 = vsel %vm568, %v559, 0
        %vm572 = vcmask 1043456
        %v574 = vsel %vm572, %v561, 0
        %576 = vmatprep.subr.mxu0 0.0
        %577 = vmatpush1.msra.mxu0 0.0
        %578 = vmatprep.subr.mxu0 0.0
        %579 = vmatpush1.msra.mxu0 0.0
        %580 = vmatprep.subr.mxu0 0.0
        %581 = vmatpush1.msra.mxu0 0.0
        %582 = vmatprep.subr.mxu0 0.0
        %583 = vmatpush1.msra.mxu0 0.0
        %584 = vmatprep.subr.mxu0 0.0
        %585 = vmatpush1.msra.mxu0 0.0
        %586 = vmatprep.subr.mxu0 0.0
        %587 = vmatpush1.msra.mxu0 0.0
        %588 = vmatprep.subr.mxu0 0.0
        %589 = vmatpush1.msra.mxu0 0.0
        %590 = vmatprep.subr.mxu0 0.0
        %591 = vmatpush1.msra.mxu0 0.0
        %592 = vmatprep.subr.mxu0 0.0
        %593 = vmatpush1.msra.mxu0 0.0
        %594 = vmatprep.subr.mxu0 0.0
        %595 = vmatpush1.msra.mxu0 0.0
        %596 = vmatprep.subr.mxu0 0.0
        %597 = vmatpush1.msra.mxu0 0.0
        %598 = vmatprep.subr.mxu0 0.0
        %599 = vmatpush1.msra.mxu0 0.0
        %600 = vmatprep.subr.mxu0 0.0
        %601 = vmatpush1.msra.mxu0 0.0
        %602 = vmatprep.subr.mxu0 0.0
        %603 = vmatpush1.msra.mxu0 0.0
        %604 = vmatprep.subr.mxu0 0.0
        %605 = vmatpush1.msra.mxu0 %v574
        %606 = vmatprep.subr.mxu0 0.0
        %607 = vmatpush1.msra.mxu0 %v560
        %608 = vmatprep.subr.mxu0 0.0
        %609 = vmatpush2.msra.mxu0 0.0
        %610 = vmatprep.subr.mxu0 0.0
        %611 = vmatpush2.msra.mxu0 0.0
        %612 = vmatprep.subr.mxu0 0.0
        %613 = vmatpush2.msra.mxu0 0.0
        %614 = vmatprep.subr.mxu0 0.0
        %615 = vmatpush2.msra.mxu0 0.0
        %616 = vmatprep.subr.mxu0 0.0
        %617 = vmatpush2.msra.mxu0 0.0
        %618 = vmatprep.subr.mxu0 0.0
        %619 = vmatpush2.msra.mxu0 0.0
        %620 = vmatprep.subr.mxu0 0.0
        %621 = vmatpush2.msra.mxu0 0.0
        %622 = vmatprep.subr.mxu0 0.0
        %623 = vmatpush2.msra.mxu0 0.0
        %624 = vmatprep.subr.mxu0 0.0
        %625 = vmatpush2.msra.mxu0 0.0
        %626 = vmatprep.subr.mxu0 0.0
        %627 = vmatpush2.msra.mxu0 0.0
        %628 = vmatprep.subr.mxu0 0.0
        %629 = vmatpush2.msra.mxu0 0.0
        %630 = vmatprep.subr.mxu0 0.0
        %631 = vmatpush2.msra.mxu0 0.0
        %632 = vmatprep.subr.mxu0 0.0
        %633 = vmatpush2.msra.mxu0 0.0
        %634 = vmatprep.subr.mxu0 0.0
        %635 = vmatpush2.msra.mxu0 0.0
        %636 = vmatprep.subr.mxu0 0.0
        %637 = vmatpush2.msra.mxu0 0.0
        %638 = vmatprep.subr.mxu0 0.0
        %639 = vmatpush2.msra.mxu0 0.0
        %640 = vmatprep.mubr.f32.mxu0 0.0
        %641 = vmatmul.mubr.f32.gmra.mxu0 %v570
        %v642 = vpop.f32.mrf.mxu0
        %v643 = vadd.f32 %v566, %v642
        %v644 = vpop.f32.mrf.mxu0
        %645 = vdwg.mxu0
        %v646 = vmax.f32 %v643, 0.0
        %v647 = vld [vmem:[%s5] sm:$0xff]
        %v648 = vld [vmem:[%s6] sm:$0xff]
        %650 = vset.pattern.permute.xlu0 0
        %651 = vperm.xlu0 %650, %v648
        %v652 = vpop.permute.xlu0 %651
        %vm654 = vcmask 31744
        %v656 = vsel %vm654, %v647, 0
        %v658 = vsel %vm572, %v544, 0
        %660 = vmatprep.subr.mxu0 0.0
        %661 = vmatpush1.msra.mxu0 0.0
        %662 = vmatprep.subr.mxu0 0.0
        %663 = vmatpush1.msra.mxu0 0.0
        %664 = vmatprep.subr.mxu0 0.0
        %665 = vmatpush1.msra.mxu0 0.0
        %666 = vmatprep.subr.mxu0 0.0
        %667 = vmatpush1.msra.mxu0 0.0
        %668 = vmatprep.subr.mxu0 0.0
        %669 = vmatpush1.msra.mxu0 0.0
        %670 = vmatprep.subr.mxu0 0.0
        %671 = vmatpush1.msra.mxu0 0.0
        %672 = vmatprep.subr.mxu0 0.0
        %673 = vmatpush1.msra.mxu0 0.0
        %674 = vmatprep.subr.mxu0 0.0
        %675 = vmatpush1.msra.mxu0 0.0
        %676 = vmatprep.subr.mxu0 0.0
        %677 = vmatpush1.msra.mxu0 0.0
        %678 = vmatprep.subr.mxu0 0.0
        %679 = vmatpush1.msra.mxu0 0.0
        %680 = vmatprep.subr.mxu0 0.0
        %681 = vmatpush1.msra.mxu0 0.0
        %682 = vmatprep.subr.mxu0 0.0
        %683 = vmatpush1.msra.mxu0 0.0
        %684 = vmatprep.subr.mxu0 0.0
        %685 = vmatpush1.msra.mxu0 0.0
        %686 = vmatprep.subr.mxu0 0.0
        %687 = vmatpush1.msra.mxu0 0.0
        %688 = vmatprep.subr.mxu0 0.0
        %689 = vmatpush1.msra.mxu0 0.0
        %690 = vmatprep.subr.mxu0 0.0
        %691 = vmatpush1.msra.mxu0 %v658
        %692 = vmatprep.subr.mxu0 0.0
        %693 = vmatpush2.msra.mxu0 0.0
        %694 = vmatprep.subr.mxu0 0.0
        %695 = vmatpush2.msra.mxu0 0.0
        %696 = vmatprep.subr.mxu0 0.0
        %697 = vmatpush2.msra.mxu0 0.0
        %698 = vmatprep.subr.mxu0 0.0
        %699 = vmatpush2.msra.mxu0 0.0
        %700 = vmatprep.subr.mxu0 0.0
        %701 = vmatpush2.msra.mxu0 0.0
        %702 = vmatprep.subr.mxu0 0.0
        %703 = vmatpush2.msra.mxu0 0.0
        %704 = vmatprep.subr.mxu0 0.0
        %705 = vmatpush2.msra.mxu0 0.0
        %706 = vmatprep.subr.mxu0 0.0
        %707 = vmatpush2.msra.mxu0 0.0
        %708 = vmatprep.subr.mxu0 0.0
        %709 = vmatpush2.msra.mxu0 0.0
        %710 = vmatprep.subr.mxu0 0.0
        %711 = vmatpush2.msra.mxu0 0.0
        %712 = vmatprep.subr.mxu0 0.0
        %713 = vmatpush2.msra.mxu0 0.0
        %714 = vmatprep.subr.mxu0 0.0
        %715 = vmatpush2.msra.mxu0 0.0
        %716 = vmatprep.subr.mxu0 0.0
        %717 = vmatpush2.msra.mxu0 0.0
        %718 = vmatprep.subr.mxu0 0.0
        %719 = vmatpush2.msra.mxu0 0.0
        %720 = vmatprep.subr.mxu0 0.0
        %721 = vmatpush2.msra.mxu0 0.0
        %722 = vmatprep.subr.mxu0 0.0
        %723 = vmatpush2.msra.mxu0 0.0
        %724 = vmatprep.mubr.f32.mxu0 0.0
        %725 = vmatmul.mubr.f32.gmra.mxu0 %v656
        %v726 = vpop.f32.mrf.mxu0
        %v727 = vadd.f32 %v652, %v726
        %v728 = vpop.f32.mrf.mxu0
        %729 = vdwg.mxu0
        %730 = vst [vmem:[#allocation3] sm:$0xff] 0.0
        %731 = vst [vmem:[#allocation3 + $0x8] sm:$0xff] 0.0
        %732 = vst [vmem:[#allocation3 + $0x10] sm:$0xff] 0.0
        %734 = vrot.lane.b32.xlu0 %v646, 1
        %v735 = vpop.permute.xlu0 %734
        %vm737 = vcmask 1047560
        %738 = vst.msk [vmem:[#allocation3] sm:$0xff] %vm737, %v735
        %739 = vst [vmem:[#allocation3 + $0x8] sm:$0xff] %v646
        %740 = vrot.lane.b32.xlu0 %v646, 127
        %v741 = vpop.permute.xlu0 %740
        %vm743 = vcmask 1039360
        %744 = vst.msk [vmem:[#allocation3 + $0x10] sm:$0xff] %vm743, %v741
        %v745 = vld [vmem:[%s3] sm:$0xff]
        %v746 = vld [vmem:[#allocation3] sm:$0xff]
        %v747 = vld [vmem:[#allocation3 + $0x8] sm:$0xff]
        %v748 = vld [vmem:[#allocation3 + $0x10] sm:$0xff]
        %v749 = vld [vmem:[%s4] sm:$0xff]
        %751 = vset.pattern.permute.xlu0 0
        %752 = vperm.xlu0 %751, %v749
        %v753 = vpop.permute.xlu0 %752
        %vm755 = vcmask 195584
        %v757 = vsel %vm755, %v745, 0
        %759 = vmatprep.subr.mxu0 0.0
        %760 = vmatpush1.msra.mxu0 0.0
        %761 = vmatprep.subr.mxu0 0.0
        %762 = vmatpush1.msra.mxu0 0.0
        %763 = vmatprep.subr.mxu0 0.0
        %764 = vmatpush1.msra.mxu0 0.0
        %765 = vmatprep.subr.mxu0 0.0
        %766 = vmatpush1.msra.mxu0 0.0
        %767 = vmatprep.subr.mxu0 0.0
        %768 = vmatpush1.msra.mxu0 0.0
        %769 = vmatprep.subr.mxu0 0.0
        %770 = vmatpush1.msra.mxu0 0.0
        %771 = vmatprep.subr.mxu0 0.0
        %772 = vmatpush1.msra.mxu0 0.0
        %773 = vmatprep.subr.mxu0 0.0
        %774 = vmatpush1.msra.mxu0 0.0
        %775 = vmatprep.subr.mxu0 0.0
        %776 = vmatpush1.msra.mxu0 0.0
        %777 = vmatprep.subr.mxu0 0.0
        %778 = vmatpush1.msra.mxu0 0.0
        %779 = vmatprep.subr.mxu0 0.0
        %780 = vmatpush1.msra.mxu0 0.0
        %781 = vmatprep.subr.mxu0 0.0
        %782 = vmatpush1.msra.mxu0 0.0
        %783 = vmatprep.subr.mxu0 0.0
        %784 = vmatpush1.msra.mxu0 0.0
        %785 = vmatprep.subr.mxu0 0.0
        %786 = vmatpush1.msra.mxu0 %v748
        %787 = vmatprep.subr.mxu0 0.0
        %788 = vmatpush1.msra.mxu0 %v747
        %789 = vmatprep.subr.mxu0 0.0
        %790 = vmatpush1.msra.mxu0 %v746
        %791 = vmatprep.subr.mxu0 0.0
        %792 = vmatpush2.msra.mxu0 0.0
        %793 = vmatprep.subr.mxu0 0.0
        %794 = vmatpush2.msra.mxu0 0.0
        %795 = vmatprep.subr.mxu0 0.0
        %796 = vmatpush2.msra.mxu0 0.0
        %797 = vmatprep.subr.mxu0 0.0
        %798 = vmatpush2.msra.mxu0 0.0
        %799 = vmatprep.subr.mxu0 0.0
        %800 = vmatpush2.msra.mxu0 0.0
        %801 = vmatprep.subr.mxu0 0.0
        %802 = vmatpush2.msra.mxu0 0.0
        %803 = vmatprep.subr.mxu0 0.0
        %804 = vmatpush2.msra.mxu0 0.0
        %805 = vmatprep.subr.mxu0 0.0
        %806 = vmatpush2.msra.mxu0 0.0
        %807 = vmatprep.subr.mxu0 0.0
        %808 = vmatpush2.msra.mxu0 0.0
        %809 = vmatprep.subr.mxu0 0.0
        %810 = vmatpush2.msra.mxu0 0.0
        %811 = vmatprep.subr.mxu0 0.0
        %812 = vmatpush2.msra.mxu0 0.0
        %813 = vmatprep.subr.mxu0 0.0
        %814 = vmatpush2.msra.mxu0 0.0
        %815 = vmatprep.subr.mxu0 0.0
        %816 = vmatpush2.msra.mxu0 0.0
        %817 = vmatprep.subr.mxu0 0.0
        %818 = vmatpush2.msra.mxu0 0.0
        %819 = vmatprep.subr.mxu0 0.0
        %820 = vmatpush2.msra.mxu0 0.0
        %821 = vmatprep.subr.mxu0 0.0
        %822 = vmatpush2.msra.mxu0 0.0
        %823 = vmatprep.mubr.f32.mxu0 0.0
        %824 = vmatmul.mubr.f32.gmra.mxu0 %v757
        %v825 = vpop.f32.mrf.mxu0
        %v826 = vadd.f32 %v753, %v825
        %v827 = vpop.f32.mrf.mxu0
        %828 = vdwg.mxu0
        %v829 = vadd.f32 %v826, %v727
        %v830 = vmax.f32 %v829, 0.0
        %831 = vst [vmem:[#allocation4] sm:$0xff] 0.0
        %832 = vst [vmem:[#allocation4 + $0x8] sm:$0xff] 0.0
        %833 = vst [vmem:[#allocation4 + $0x10] sm:$0xff] 0.0
        %835 = vrot.lane.b32.xlu0 %v830, 2
        %v836 = vpop.permute.xlu0 %835
        %vm838 = vcmask 1047568
        %839 = vst.msk [vmem:[#allocation4] sm:$0xff] %vm838, %v836
        %840 = vst [vmem:[#allocation4 + $0x8] sm:$0xff] %v830
        %841 = vrot.lane.b32.xlu0 %v830, 126
        %v842 = vpop.permute.xlu0 %841
        %vm844 = vcmask 1031168
        %845 = vst.msk [vmem:[#allocation4 + $0x10] sm:$0xff] %vm844, %v842
        %v846 = vld [vmem:[%s7] sm:$0xff]
        %v847 = vld [vmem:[#allocation4] sm:$0xff]
        %v848 = vld [vmem:[#allocation4 + $0x8] sm:$0xff]
        %v849 = vld [vmem:[#allocation4 + $0x10] sm:$0xff]
        %v850 = vld [vmem:[%s8] sm:$0xff]
        %852 = vset.pattern.permute.xlu0 0
        %853 = vperm.xlu0 %852, %v850
        %v854 = vpop.permute.xlu0 %853
        %v857 = vsel %vm755, %v846, 0
        %859 = vmatprep.subr.mxu0 0.0
        %860 = vmatpush1.msra.mxu0 0.0
        %861 = vmatprep.subr.mxu0 0.0
        %862 = vmatpush1.msra.mxu0 0.0
        %863 = vmatprep.subr.mxu0 0.0
        %864 = vmatpush1.msra.mxu0 0.0
        %865 = vmatprep.subr.mxu0 0.0
        %866 = vmatpush1.msra.mxu0 0.0
        %867 = vmatprep.subr.mxu0 0.0
        %868 = vmatpush1.msra.mxu0 0.0
        %869 = vmatprep.subr.mxu0 0.0
        %870 = vmatpush1.msra.mxu0 0.0
        %871 = vmatprep.subr.mxu0 0.0
        %872 = vmatpush1.msra.mxu0 0.0
        %873 = vmatprep.subr.mxu0 0.0
        %874 = vmatpush1.msra.mxu0 0.0
        %875 = vmatprep.subr.mxu0 0.0
        %876 = vmatpush1.msra.mxu0 0.0
        %877 = vmatprep.subr.mxu0 0.0
        %878 = vmatpush1.msra.mxu0 0.0
        %879 = vmatprep.subr.mxu0 0.0
        %880 = vmatpush1.msra.mxu0 0.0
        %881 = vmatprep.subr.mxu0 0.0
        %882 = vmatpush1.msra.mxu0 0.0
        %883 = vmatprep.subr.mxu0 0.0
        %884 = vmatpush1.msra.mxu0 0.0
        %885 = vmatprep.subr.mxu0 0.0
        %886 = vmatpush1.msra.mxu0 %v849
        %887 = vmatprep.subr.mxu0 0.0
        %888 = vmatpush1.msra.mxu0 %v848
        %889 = vmatprep.subr.mxu0 0.0
        %890 = vmatpush1.msra.mxu0 %v847
        %891 = vmatprep.subr.mxu0 0.0
        %892 = vmatpush2.msra.mxu0 0.0
        %893 = vmatprep.subr.mxu0 0.0
        %894 = vmatpush2.msra.mxu0 0.0
        %895 = vmatprep.subr.mxu0 0.0
        %896 = vmatpush2.msra.mxu0 0.0
        %897 = vmatprep.subr.mxu0 0.0
        %898 = vmatpush2.msra.mxu0 0.0
        %899 = vmatprep.subr.mxu0 0.0
        %900 = vmatpush2.msra.mxu0 0.0
        %901 = vmatprep.subr.mxu0 0.0
        %902 = vmatpush2.msra.mxu0 0.0
        %903 = vmatprep.subr.mxu0 0.0
        %904 = vmatpush2.msra.mxu0 0.0
        %905 = vmatprep.subr.mxu0 0.0
        %906 = vmatpush2.msra.mxu0 0.0
        %907 = vmatprep.subr.mxu0 0.0
        %908 = vmatpush2.msra.mxu0 0.0
        %909 = vmatprep.subr.mxu0 0.0
        %910 = vmatpush2.msra.mxu0 0.0
        %911 = vmatprep.subr.mxu0 0.0
        %912 = vmatpush2.msra.mxu0 0.0
        %913 = vmatprep.subr.mxu0 0.0
        %914 = vmatpush2.msra.mxu0 0.0
        %915 = vmatprep.subr.mxu0 0.0
        %916 = vmatpush2.msra.mxu0 0.0
        %917 = vmatprep.subr.mxu0 0.0
        %918 = vmatpush2.msra.mxu0 0.0
        %919 = vmatprep.subr.mxu0 0.0
        %920 = vmatpush2.msra.mxu0 0.0
        %921 = vmatprep.subr.mxu0 0.0
        %922 = vmatpush2.msra.mxu0 0.0
        %923 = vmatprep.mubr.f32.mxu0 0.0
        %924 = vmatmul.mubr.f32.gmra.mxu0 %v857
        %v925 = vpop.f32.mrf.mxu0
        %v926 = vadd.f32 %v854, %v925
        %v927 = vpop.f32.mrf.mxu0
        %928 = vdwg.mxu0
        %v929 = vmax.f32 %v926, 0.0
        %930 = vst [vmem:[#allocation5] sm:$0xff] 0.0
        %931 = vst [vmem:[#allocation5 + $0x8] sm:$0xff] 0.0
        %932 = vst [vmem:[#allocation5 + $0x10] sm:$0xff] 0.0
        %934 = vrot.lane.b32.xlu0 %v929, 2
        %v935 = vpop.permute.xlu0 %934
        %937 = vst.msk [vmem:[#allocation5] sm:$0xff] %vm838, %v935
        %938 = vst [vmem:[#allocation5 + $0x8] sm:$0xff] %v929
        %939 = vrot.lane.b32.xlu0 %v929, 126
        %v940 = vpop.permute.xlu0 %939
        %942 = vst.msk [vmem:[#allocation5 + $0x10] sm:$0xff] %vm844, %v940
        %v943 = vld [vmem:[%s9] sm:$0xff]
        %v944 = vld [vmem:[#allocation5] sm:$0xff]
        %v945 = vld [vmem:[#allocation5 + $0x8] sm:$0xff]
        %v946 = vld [vmem:[#allocation5 + $0x10] sm:$0xff]
        %v947 = vld [vmem:[%s10] sm:$0xff]
        %949 = vset.pattern.permute.xlu0 0
        %950 = vperm.xlu0 %949, %v947
        %v951 = vpop.permute.xlu0 %950
        %v954 = vsel %vm755, %v943, 0
        %956 = vmatprep.subr.mxu0 0.0
        %957 = vmatpush1.msra.mxu0 0.0
        %958 = vmatprep.subr.mxu0 0.0
        %959 = vmatpush1.msra.mxu0 0.0
        %960 = vmatprep.subr.mxu0 0.0
        %961 = vmatpush1.msra.mxu0 0.0
        %962 = vmatprep.subr.mxu0 0.0
        %963 = vmatpush1.msra.mxu0 0.0
        %964 = vmatprep.subr.mxu0 0.0
        %965 = vmatpush1.msra.mxu0 0.0
        %966 = vmatprep.subr.mxu0 0.0
        %967 = vmatpush1.msra.mxu0 0.0
        %968 = vmatprep.subr.mxu0 0.0
        %969 = vmatpush1.msra.mxu0 0.0
        %970 = vmatprep.subr.mxu0 0.0
        %971 = vmatpush1.msra.mxu0 0.0
        %972 = vmatprep.subr.mxu0 0.0
        %973 = vmatpush1.msra.mxu0 0.0
        %974 = vmatprep.subr.mxu0 0.0
        %975 = vmatpush1.msra.mxu0 0.0
        %976 = vmatprep.subr.mxu0 0.0
        %977 = vmatpush1.msra.mxu0 0.0
        %978 = vmatprep.subr.mxu0 0.0
        %979 = vmatpush1.msra.mxu0 0.0
        %980 = vmatprep.subr.mxu0 0.0
        %981 = vmatpush1.msra.mxu0 0.0
        %982 = vmatprep.subr.mxu0 0.0
        %983 = vmatpush1.msra.mxu0 %v946
        %984 = vmatprep.subr.mxu0 0.0
        %985 = vmatpush1.msra.mxu0 %v945
        %986 = vmatprep.subr.mxu0 0.0
        %987 = vmatpush1.msra.mxu0 %v944
        %988 = vmatprep.subr.mxu0 0.0
        %989 = vmatpush2.msra.mxu0 0.0
        %990 = vmatprep.subr.mxu0 0.0
        %991 = vmatpush2.msra.mxu0 0.0
        %992 = vmatprep.subr.mxu0 0.0
        %993 = vmatpush2.msra.mxu0 0.0
        %994 = vmatprep.subr.mxu0 0.0
        %995 = vmatpush2.msra.mxu0 0.0
        %996 = vmatprep.subr.mxu0 0.0
        %997 = vmatpush2.msra.mxu0 0.0
        %998 = vmatprep.subr.mxu0 0.0
        %999 = vmatpush2.msra.mxu0 0.0
        %1000 = vmatprep.subr.mxu0 0.0
        %1001 = vmatpush2.msra.mxu0 0.0
        %1002 = vmatprep.subr.mxu0 0.0
        %1003 = vmatpush2.msra.mxu0 0.0
        %1004 = vmatprep.subr.mxu0 0.0
        %1005 = vmatpush2.msra.mxu0 0.0
        %1006 = vmatprep.subr.mxu0 0.0
        %1007 = vmatpush2.msra.mxu0 0.0
        %1008 = vmatprep.subr.mxu0 0.0
        %1009 = vmatpush2.msra.mxu0 0.0
        %1010 = vmatprep.subr.mxu0 0.0
        %1011 = vmatpush2.msra.mxu0 0.0
        %1012 = vmatprep.subr.mxu0 0.0
        %1013 = vmatpush2.msra.mxu0 0.0
        %1014 = vmatprep.subr.mxu0 0.0
        %1015 = vmatpush2.msra.mxu0 0.0
        %1016 = vmatprep.subr.mxu0 0.0
        %1017 = vmatpush2.msra.mxu0 0.0
        %1018 = vmatprep.subr.mxu0 0.0
        %1019 = vmatpush2.msra.mxu0 0.0
        %1020 = vmatprep.mubr.f32.mxu0 0.0
        %1021 = vmatmul.mubr.f32.gmra.mxu0 %v954
        %v1022 = vpop.f32.mrf.mxu0
        %v1023 = vadd.f32 %v951, %v1022
        %v1024 = vpop.f32.mrf.mxu0
        %1025 = vdwg.mxu0
        %v1026 = vadd.f32 %v1023, %v830
        %v1027 = vmax.f32 %v1026, 0.0
        %1028 = vst [vmem:[#allocation6] sm:$0xff] 0.0
        %1029 = vst [vmem:[#allocation6 + $0x8] sm:$0xff] 0.0
        %1030 = vst [vmem:[#allocation6 + $0x10] sm:$0xff] 0.0
        %1032 = vrot.lane.b32.xlu0 %v1027, 4
        %v1033 = vpop.permute.xlu0 %1032
        %vm1035 = vcmask 1047584
        %1036 = vst.msk [vmem:[#allocation6] sm:$0xff] %vm1035, %v1033
        %1037 = vst [vmem:[#allocation6 + $0x8] sm:$0xff] %v1027
        %1038 = vrot.lane.b32.xlu0 %v1027, 124
        %v1039 = vpop.permute.xlu0 %1038
        %vm1041 = vcmask 1014784
        %1042 = vst.msk [vmem:[#allocation6 + $0x10] sm:$0xff] %vm1041, %v1039
        %v1043 = vld [vmem:[%s11] sm:$0xff]
        %v1044 = vld [vmem:[%s11 + $0x8] sm:$0xff]
        %v1045 = vld [vmem:[#allocation6] sm:$0xff]
        %v1046 = vld [vmem:[#allocation6 + $0x8] sm:$0xff]
        %v1047 = vld [vmem:[#allocation6 + $0x10] sm:$0xff]
        %v1048 = vld [vmem:[%s12] sm:$0xff]
        %v1049 = vld [vmem:[%s12 + $0x8] sm:$0xff]
        %1051 = vset.pattern.permute.xlu0 0
        %1052 = vperm.xlu0 %1051, %v1048
        %v1053 = vpop.permute.xlu0 %1052
        %1056 = vset.pattern.permute.xlu0 0
        %1057 = vperm.xlu0 %1056, %v1049
        %v1058 = vpop.permute.xlu0 %1057
        %v1061 = vsel %vm755, %v1043, 0
        %v1064 = vsel %vm755, %v1044, 0
        %1066 = vmatprep.subr.mxu0 0.0
        %1067 = vmatpush1.msra.mxu0 0.0
        %1068 = vmatprep.subr.mxu0 0.0
        %1069 = vmatpush1.msra.mxu0 0.0
        %1070 = vmatprep.subr.mxu0 0.0
        %1071 = vmatpush1.msra.mxu0 0.0
        %1072 = vmatprep.subr.mxu0 0.0
        %1073 = vmatpush1.msra.mxu0 0.0
        %1074 = vmatprep.subr.mxu0 0.0
        %1075 = vmatpush1.msra.mxu0 0.0
        %1076 = vmatprep.subr.mxu0 0.0
        %1077 = vmatpush1.msra.mxu0 0.0
        %1078 = vmatprep.subr.mxu0 0.0
        %1079 = vmatpush1.msra.mxu0 0.0
        %1080 = vmatprep.subr.mxu0 0.0
        %1081 = vmatpush1.msra.mxu0 0.0
        %1082 = vmatprep.subr.mxu0 0.0
        %1083 = vmatpush1.msra.mxu0 0.0
        %1084 = vmatprep.subr.mxu0 0.0
        %1085 = vmatpush1.msra.mxu0 0.0
        %1086 = vmatprep.subr.mxu0 0.0
        %1087 = vmatpush1.msra.mxu0 0.0
        %1088 = vmatprep.subr.mxu0 0.0
        %1089 = vmatpush1.msra.mxu0 0.0
        %1090 = vmatprep.subr.mxu0 0.0
        %1091 = vmatpush1.msra.mxu0 0.0
        %1092 = vmatprep.subr.mxu0 0.0
        %1093 = vmatpush1.msra.mxu0 %v1047
        %1094 = vmatprep.subr.mxu0 0.0
        %1095 = vmatpush1.msra.mxu0 %v1046
        %1096 = vmatprep.subr.mxu0 0.0
        %1097 = vmatpush1.msra.mxu0 %v1045
        %1098 = vmatprep.subr.mxu0 0.0
        %1099 = vmatpush2.msra.mxu0 0.0
        %1100 = vmatprep.subr.mxu0 0.0
        %1101 = vmatpush2.msra.mxu0 0.0
        %1102 = vmatprep.subr.mxu0 0.0
        %1103 = vmatpush2.msra.mxu0 0.0
        %1104 = vmatprep.subr.mxu0 0.0
        %1105 = vmatpush2.msra.mxu0 0.0
        %1106 = vmatprep.subr.mxu0 0.0
        %1107 = vmatpush2.msra.mxu0 0.0
        %1108 = vmatprep.subr.mxu0 0.0
        %1109 = vmatpush2.msra.mxu0 0.0
        %1110 = vmatprep.subr.mxu0 0.0
        %1111 = vmatpush2.msra.mxu0 0.0
        %1112 = vmatprep.subr.mxu0 0.0
        %1113 = vmatpush2.msra.mxu0 0.0
        %1114 = vmatprep.subr.mxu0 0.0
        %1115 = vmatpush2.msra.mxu0 0.0
        %1116 = vmatprep.subr.mxu0 0.0
        %1117 = vmatpush2.msra.mxu0 0.0
        %1118 = vmatprep.subr.mxu0 0.0
        %1119 = vmatpush2.msra.mxu0 0.0
        %1120 = vmatprep.subr.mxu0 0.0
        %1121 = vmatpush2.msra.mxu0 0.0
        %1122 = vmatprep.subr.mxu0 0.0
        %1123 = vmatpush2.msra.mxu0 0.0
        %1124 = vmatprep.subr.mxu0 0.0
        %1125 = vmatpush2.msra.mxu0 0.0
        %1126 = vmatprep.subr.mxu0 0.0
        %1127 = vmatpush2.msra.mxu0 0.0
        %1128 = vmatprep.subr.mxu0 0.0
        %1129 = vmatpush2.msra.mxu0 0.0
        %1130 = vmatprep.mubr.f32.mxu0 0.0
        %1131 = vmatmul.mubr.f32.gmra.mxu0 %v1061
        %v1132 = vpop.f32.mrf.mxu0
        %v1133 = vadd.f32 %v1053, %v1132
        %v1134 = vpop.f32.mrf.mxu0
        %1135 = vmatprep.mubr.f32.mxu0 0.0
        %1136 = vmatmul.mubr.f32.gmra.mxu0 %v1064
        %v1137 = vpop.f32.mrf.mxu0
        %v1138 = vadd.f32 %v1058, %v1137
        %v1139 = vpop.f32.mrf.mxu0
        %1140 = vdwg.mxu0
        %v1141 = vmax.f32 %v1133, 0.0
        %v1142 = vmax.f32 %v1138, 0.0
        %v1143 = vld [vmem:[%s15] sm:$0xff]
        %v1144 = vld [vmem:[%s15 + $0x8] sm:$0xff]
        %v1145 = vld [vmem:[%s16] sm:$0xff]
        %v1146 = vld [vmem:[%s16 + $0x8] sm:$0xff]
        %1148 = vset.pattern.permute.xlu0 0
        %1149 = vperm.xlu0 %1148, %v1145
        %v1150 = vpop.permute.xlu0 %1149
        %1153 = vset.pattern.permute.xlu0 0
        %1154 = vperm.xlu0 %1153, %v1146
        %v1155 = vpop.permute.xlu0 %1154
        %vm1157 = vcmask 64512
        %v1159 = vsel %vm1157, %v1143, 0
        %v1162 = vsel %vm1157, %v1144, 0
        %1164 = vmatprep.subr.mxu0 0.0
        %1165 = vmatpush1.msra.mxu0 0.0
        %1166 = vmatprep.subr.mxu0 0.0
        %1167 = vmatpush1.msra.mxu0 0.0
        %1168 = vmatprep.subr.mxu0 0.0
        %1169 = vmatpush1.msra.mxu0 0.0
        %1170 = vmatprep.subr.mxu0 0.0
        %1171 = vmatpush1.msra.mxu0 0.0
        %1172 = vmatprep.subr.mxu0 0.0
        %1173 = vmatpush1.msra.mxu0 0.0
        %1174 = vmatprep.subr.mxu0 0.0
        %1175 = vmatpush1.msra.mxu0 0.0
        %1176 = vmatprep.subr.mxu0 0.0
        %1177 = vmatpush1.msra.mxu0 0.0
        %1178 = vmatprep.subr.mxu0 0.0
        %1179 = vmatpush1.msra.mxu0 0.0
        %1180 = vmatprep.subr.mxu0 0.0
        %1181 = vmatpush1.msra.mxu0 0.0
        %1182 = vmatprep.subr.mxu0 0.0
        %1183 = vmatpush1.msra.mxu0 0.0
        %1184 = vmatprep.subr.mxu0 0.0
        %1185 = vmatpush1.msra.mxu0 0.0
        %1186 = vmatprep.subr.mxu0 0.0
        %1187 = vmatpush1.msra.mxu0 0.0
        %1188 = vmatprep.subr.mxu0 0.0
        %1189 = vmatpush1.msra.mxu0 0.0
        %1190 = vmatprep.subr.mxu0 0.0
        %1191 = vmatpush1.msra.mxu0 0.0
        %1192 = vmatprep.subr.mxu0 0.0
        %1193 = vmatpush1.msra.mxu0 0.0
        %1194 = vmatprep.subr.mxu0 0.0
        %1195 = vmatpush1.msra.mxu0 %v1027
        %1196 = vmatprep.subr.mxu0 0.0
        %1197 = vmatpush2.msra.mxu0 0.0
        %1198 = vmatprep.subr.mxu0 0.0
        %1199 = vmatpush2.msra.mxu0 0.0
        %1200 = vmatprep.subr.mxu0 0.0
        %1201 = vmatpush2.msra.mxu0 0.0
        %1202 = vmatprep.subr.mxu0 0.0
        %1203 = vmatpush2.msra.mxu0 0.0
        %1204 = vmatprep.subr.mxu0 0.0
        %1205 = vmatpush2.msra.mxu0 0.0
        %1206 = vmatprep.subr.mxu0 0.0
        %1207 = vmatpush2.msra.mxu0 0.0
        %1208 = vmatprep.subr.mxu0 0.0
        %1209 = vmatpush2.msra.mxu0 0.0
        %1210 = vmatprep.subr.mxu0 0.0
        %1211 = vmatpush2.msra.mxu0 0.0
        %1212 = vmatprep.subr.mxu0 0.0
        %1213 = vmatpush2.msra.mxu0 0.0
        %1214 = vmatprep.subr.mxu0 0.0
        %1215 = vmatpush2.msra.mxu0 0.0
        %1216 = vmatprep.subr.mxu0 0.0
        %1217 = vmatpush2.msra.mxu0 0.0
        %1218 = vmatprep.subr.mxu0 0.0
        %1219 = vmatpush2.msra.mxu0 0.0
        %1220 = vmatprep.subr.mxu0 0.0
        %1221 = vmatpush2.msra.mxu0 0.0
        %1222 = vmatprep.subr.mxu0 0.0
        %1223 = vmatpush2.msra.mxu0 0.0
        %1224 = vmatprep.subr.mxu0 0.0
        %1225 = vmatpush2.msra.mxu0 0.0
        %1226 = vmatprep.subr.mxu0 0.0
        %1227 = vmatpush2.msra.mxu0 0.0
        %1228 = vmatprep.mubr.f32.mxu0 0.0
        %1229 = vmatmul.mubr.f32.gmra.mxu0 %v1159
        %v1230 = vpop.f32.mrf.mxu0
        %v1231 = vadd.f32 %v1150, %v1230
        %v1232 = vpop.f32.mrf.mxu0
        %1233 = vmatprep.mubr.f32.mxu0 0.0
        %1234 = vmatmul.mubr.f32.gmra.mxu0 %v1162
        %v1235 = vpop.f32.mrf.mxu0
        %v1236 = vadd.f32 %v1155, %v1235
        %v1237 = vpop.f32.mrf.mxu0
        %1238 = vdwg.mxu0
        %1239 = vst [vmem:[#allocation7] sm:$0xff] 0.0
        %1240 = vst [vmem:[#allocation7 + $0x8] sm:$0xff] 0.0
        %1241 = vst [vmem:[#allocation7 + $0x10] sm:$0xff] 0.0
        %1242 = vst [vmem:[#allocation7 + $0x18] sm:$0xff] 0.0
        %1243 = vst [vmem:[#allocation7 + $0x20] sm:$0xff] 0.0
        %1244 = vst [vmem:[#allocation7 + $0x28] sm:$0xff] 0.0
        %1247 = vrot.lane.b32.xlu0 %v1141, 4
        %v1248 = vpop.permute.xlu0 %1247
        %1249 = vrot.lane.b32.xlu0 %v1142, 4
        %v1250 = vpop.permute.xlu0 %1249
        %1253 = vst.msk [vmem:[#allocation7] sm:$0xff] %vm1035, %v1248
        %1254 = vst.msk [vmem:[#allocation7 + $0x8] sm:$0xff] %vm1035, %v1250
        %1255 = vst [vmem:[#allocation7 + $0x10] sm:$0xff] %v1141
        %1256 = vst [vmem:[#allocation7 + $0x18] sm:$0xff] %v1142
        %1257 = vrot.lane.b32.xlu0 %v1141, 124
        %v1258 = vpop.permute.xlu0 %1257
        %1259 = vrot.lane.b32.xlu0 %v1142, 124
        %v1260 = vpop.permute.xlu0 %1259
        %1263 = vst.msk [vmem:[#allocation7 + $0x20] sm:$0xff] %vm1041, %v1258
        %1264 = vst.msk [vmem:[#allocation7 + $0x28] sm:$0xff] %vm1041, %v1260
        %v1265 = vld [vmem:[%s13] sm:$0xff]
        %v1266 = vld [vmem:[%s13 + $0x8] sm:$0xff]
        %v1267 = vld [vmem:[#allocation7] sm:$0xff]
        %v1268 = vld [vmem:[#allocation7 + $0x8] sm:$0xff]
        %v1269 = vld [vmem:[#allocation7 + $0x10] sm:$0xff]
        %v1270 = vld [vmem:[#allocation7 + $0x18] sm:$0xff]
        %v1271 = vld [vmem:[#allocation7 + $0x20] sm:$0xff]
        %v1272 = vld [vmem:[#allocation7 + $0x28] sm:$0xff]
        %v1273 = vld [vmem:[%s14] sm:$0xff]
        %v1274 = vld [vmem:[%s14 + $0x8] sm:$0xff]
        %1276 = vset.pattern.permute.xlu0 0
        %1277 = vperm.xlu0 %1276, %v1273
        %v1278 = vpop.permute.xlu0 %1277
        %1281 = vset.pattern.permute.xlu0 0
        %1282 = vperm.xlu0 %1281, %v1274
        %v1283 = vpop.permute.xlu0 %1282
        %vm1285 = vcmask 392192
        %v1287 = vsel %vm1285, %v1265, 0
        %v1290 = vsel %vm1285, %v1266, 0
        %1292 = vmatprep.subr.mxu0 0.0
        %1293 = vmatpush1.msra.mxu0 0.0
        %1294 = vmatprep.subr.mxu0 0.0
        %1295 = vmatpush1.msra.mxu0 0.0
        %1296 = vmatprep.subr.mxu0 0.0
        %1297 = vmatpush1.msra.mxu0 0.0
        %1298 = vmatprep.subr.mxu0 0.0
        %1299 = vmatpush1.msra.mxu0 0.0
        %1300 = vmatprep.subr.mxu0 0.0
        %1301 = vmatpush1.msra.mxu0 0.0
        %1302 = vmatprep.subr.mxu0 0.0
        %1303 = vmatpush1.msra.mxu0 0.0
        %1304 = vmatprep.subr.mxu0 0.0
        %1305 = vmatpush1.msra.mxu0 0.0
        %1306 = vmatprep.subr.mxu0 0.0
        %1307 = vmatpush1.msra.mxu0 0.0
        %1308 = vmatprep.subr.mxu0 0.0
        %1309 = vmatpush1.msra.mxu0 0.0
        %1310 = vmatprep.subr.mxu0 0.0
        %1311 = vmatpush1.msra.mxu0 0.0
        %1312 = vmatprep.subr.mxu0 0.0
        %1313 = vmatpush1.msra.mxu0 %v1272
        %1314 = vmatprep.subr.mxu0 0.0
        %1315 = vmatpush1.msra.mxu0 %v1271
        %1316 = vmatprep.subr.mxu0 0.0
        %1317 = vmatpush1.msra.mxu0 %v1270
        %1318 = vmatprep.subr.mxu0 0.0
        %1319 = vmatpush1.msra.mxu0 %v1269
        %1320 = vmatprep.subr.mxu0 0.0
        %1321 = vmatpush1.msra.mxu0 %v1268
        %1322 = vmatprep.subr.mxu0 0.0
        %1323 = vmatpush1.msra.mxu0 %v1267
        %1324 = vmatprep.subr.mxu0 0.0
        %1325 = vmatpush2.msra.mxu0 0.0
        %1326 = vmatprep.subr.mxu0 0.0
        %1327 = vmatpush2.msra.mxu0 0.0
        %1328 = vmatprep.subr.mxu0 0.0
        %1329 = vmatpush2.msra.mxu0 0.0
        %1330 = vmatprep.subr.mxu0 0.0
        %1331 = vmatpush2.msra.mxu0 0.0
        %1332 = vmatprep.subr.mxu0 0.0
        %1333 = vmatpush2.msra.mxu0 0.0
        %1334 = vmatprep.subr.mxu0 0.0
        %1335 = vmatpush2.msra.mxu0 0.0
        %1336 = vmatprep.subr.mxu0 0.0
        %1337 = vmatpush2.msra.mxu0 0.0
        %1338 = vmatprep.subr.mxu0 0.0
        %1339 = vmatpush2.msra.mxu0 0.0
        %1340 = vmatprep.subr.mxu0 0.0
        %1341 = vmatpush2.msra.mxu0 0.0
        %1342 = vmatprep.subr.mxu0 0.0
        %1343 = vmatpush2.msra.mxu0 0.0
        %1344 = vmatprep.subr.mxu0 0.0
        %1345 = vmatpush2.msra.mxu0 0.0
        %1346 = vmatprep.subr.mxu0 0.0
        %1347 = vmatpush2.msra.mxu0 0.0
        %1348 = vmatprep.subr.mxu0 0.0
        %1349 = vmatpush2.msra.mxu0 0.0
        %1350 = vmatprep.subr.mxu0 0.0
        %1351 = vmatpush2.msra.mxu0 0.0
        %1352 = vmatprep.subr.mxu0 0.0
        %1353 = vmatpush2.msra.mxu0 0.0
        %1354 = vmatprep.subr.mxu0 0.0
        %1355 = vmatpush2.msra.mxu0 0.0
        %1356 = vmatprep.mubr.f32.mxu0 0.0
        %1357 = vmatmul.mubr.f32.gmra.mxu0 %v1287
        %v1358 = vpop.f32.mrf.mxu0
        %v1359 = vadd.f32 %v1278, %v1358
        %v1360 = vpop.f32.mrf.mxu0
        %1361 = vmatprep.mubr.f32.mxu0 0.0
        %1362 = vmatmul.mubr.f32.gmra.mxu0 %v1290
        %v1363 = vpop.f32.mrf.mxu0
        %v1364 = vadd.f32 %v1283, %v1363
        %v1365 = vpop.f32.mrf.mxu0
        %1366 = vdwg.mxu0
        %v1367 = vadd.f32 %v1359, %v1231
        %v1368 = vadd.f32 %v1364, %v1236
        %v1369 = vmax.f32 %v1367, 0.0
        %v1370 = vmax.f32 %v1368, 0.0
        %1371 = vst [vmem:[%s539] sm:$0xff] %v1369
        %1372 = vst [vmem:[%s539 + $0x8] sm:$0xff] %v1370
        %s1373 = sand.u32 %s401, 1
        %s1374 = scalar_lea.sflag [#allocation9], %s1373
        %s1375 = sand.u32 %s401, 1
        %s1376 = smul.addr %s1375, 16
        %s1377 = scalar_lea.vmem [#allocation8], %s1376
        // Predicated region
        $region89: #{temporal_conv_net.1} parent=87 // pred_check
          %p1378 = pneg %p411
        $region90: #{temporal_conv_net.1} parent=87 // pred_check_branch
          %1380 = sbr.rel (%p1378) target = $region92
        $region91: #{temporal_conv_net.1} parent=87 // pred_region
          %s1382 = ssub.s32 256, 256
          %1383 = vsyncadd %s1374, %s1382
          %s1384 = smul.addr %s31, 2
          %s1385 = smul.addr %s1384, 128
          %s1386 = scalar_lea.hbm %s17, %s1385
          %s1387 = sshll.u32 %s1377, 4
          %s1388 = int_to_ptr.vmem [resolvable:$true] %s1387
          %1393 = dma.vmem_to_hbm [thread:$0]  %s1388, 256, %s1386, %s1374, 128, 128, 8
        $region92: #{temporal_conv_net.1} parent=87 // pred_fallthru
          _
      $region88: #{temporal_conv_net.1} parent=5 // pred_fallthru
        _
      %p1394 = scmp.le.s32.totalorder 2, %s26
      // Predicated region
      $region93: #{temporal_conv_net.1} parent=5 // pred_check
        %p1395 = pneg %p1394
      $region94: #{temporal_conv_net.1} parent=5 // pred_check_branch
        %1397 = sbr.rel (%p1395) target = $region96
      $region95: #{temporal_conv_net.1} parent=5 // pred_region
        %s1398 = ssub.s32 %s26, 2
        // Predicated region
        $region97: #{temporal_conv_net.1} parent=95 // pred_check
          %p1399 = pneg %p417
        $region98: #{temporal_conv_net.1} parent=95 // pred_check_branch
          %1401 = sbr.rel (%p1399) target = $region100
        $region99: #{temporal_conv_net.1} parent=95 // pred_region
          %s1402 = sand.u32 %s402, 1
          %s1403 = scalar_lea.sflag [#allocation9], %s1402
          %s1404 = sand.u32 %s402, 1
          %s1405 = smul.addr %s1404, 16
          %s1406 = scalar_lea.vmem [#allocation8], %s1405
          %1407 = dma.done %s1403, 256
        $region100: #{temporal_conv_net.1} parent=95 // pred_fallthru
          _
      $region96: #{temporal_conv_net.1} parent=5 // pred_fallthru
        _
    $region6: #{temporal_conv_net.1} parent=1 // loop_footer
      %s30 = sadd.s32 1, %s26
    $region7: #{temporal_conv_net.1} parent=1 // loop_footer_branch
      %25 = sbr.rel target = $region3
    $region8: #{temporal_conv_net.1} parent=1 // loop_exit
      _
    %1408 = vsyncpa [#allocation9], 1
    %s1409 = scalar_lea.sflag [#allocation9], 1
    %1410 = vsyncpa %s1409, 1

</llo_original>
